<compile_context>
chip_gen: v5e
topology: v5e:2x2
jax: 0.10.0
libtpu: 0.0.40
codegen_flags: <defaults>
</compile_context>

<pallas_src>
import functools
import math

import jax
import jax.numpy as jnp
from jax.experimental import pallas as pl
from jax.experimental.pallas import tpu as pltpu

_TM = 512          # M-tile cap for matmuls
_TN = 512          # N-tile cap for matmuls
_THW = 512         # spatial-tile cap for the standalone global-pool kernel
_DW_ROWS = 8       # max output rows per depthwise grid step


def _rup(v, m):
    return (v + m - 1) // m * m


def _pick_rows(ho, cap=_DW_ROWS):
    # largest divisor of ho that is <= cap (so row tiles are always full / in-bounds)
    r = min(ho, cap)
    while ho % r:
        r -= 1
    return r


def _vmem_limit_bytes():
    # v5e/v6e: 128 MiB physical VMEM -> ~96 MiB scoped; v7x: 64 MiB -> ~48 MiB scoped.
    try:
        cap = pltpu.get_tpu_info().vmem_capacity_bytes
        return int(min(max(cap - (16 << 20), 32 << 20), 96 << 20))
    except Exception:
        return 48 << 20


_VMEM_LIMIT = _vmem_limit_bytes()


def _cp(sem):
    return pltpu.CompilerParams(dimension_semantics=sem, vmem_limit_bytes=_VMEM_LIMIT)


# ----------------------------- Pallas kernels ------------------------------

def _mm_kernel(x_ref, w_ref, s_ref, b_ref, *rest, act, has_ss, has_res):
    # y = act((x [* se_gate]) @ w * scale + bias) [+ residual]; K is fully in-block,
    # so there is no accumulation axis and no scratch.
    o_ref = rest[-1]
    idx = 0
    ss_ref = None
    res_ref = None
    if has_ss:
        ss_ref = rest[idx]
        idx += 1
    if has_res:
        res_ref = rest[idx]
        idx += 1

    x = x_ref[...]                                            # (tm, K) bf16
    if has_ss:
        x = x * ss_ref[...]                                   # (1, K) bf16 SE gate
    y = jnp.dot(x, w_ref[...], preferred_element_type=jnp.float32)
    y = y * s_ref[...] + b_ref[...]
    if act == "silu":
        y = y * jax.nn.sigmoid(y)
    elif act == "sigmoid":
        y = jax.nn.sigmoid(y)
    if has_res:
        y = y + res_ref[...].astype(jnp.float32)
    o_ref[...] = y.astype(o_ref.dtype)


def _dw_kernel(*refs, k, stride, rows, wfull, act, inv_hw, fuse_pool):
    # Depthwise conv over a tile of `rows` output rows; the whole padded per-sample
    # image is resident in VMEM (its block index is constant across the row axis).
    if fuse_pool:
        x_ref, w_ref, s_ref, b_ref, o_ref, pool_ref, acc_ref, pacc_ref = refs
    else:
        x_ref, w_ref, s_ref, b_ref, o_ref, acc_ref = refs
        pool_ref = pacc_ref = None

    r = pl.program_id(1)

    if fuse_pool:
        @pl.when(r == 0)
        def _():
            pacc_ref[...] = jnp.zeros_like(pacc_ref)

    acc_ref[...] = jnp.zeros_like(acc_ref)

    wp = x_ref.shape[1]
    c = x_ref.shape[2]
    span = rows * stride
    r0 = r * span

    for i in range(k):                                        # static row taps
        slab = x_ref[pl.ds(r0 + i, span), :, :]               # (span, Wp, C) bf16
        if stride > 1:
            # pick every stride-th row via a leading-dim reshape (no strided slice)
            slab = slab.reshape(rows, stride, wp, c)[:, 0]    # (rows, Wp, C)
        for j in range(k):                                    # static column taps
            acc_ref[...] += slab[:, j:j + wfull, :] * w_ref[i, j:j + 1, :]

    y = acc_ref[...] * s_ref[...] + b_ref[...]                # fused folded-BN
    if act == "silu":
        y = y * jax.nn.sigmoid(y)
    o_ref[...] = y.astype(o_ref.dtype)

    if fuse_pool:
        # fused global average pool of the DW output (SE squeeze input)
        psum = jnp.sum(y, axis=1)                             # (rows, C)
        pacc_ref[...] += jnp.sum(psum, axis=0, keepdims=True)

        @pl.when(r == pl.num_programs(1) - 1)
        def _():
            pool_ref[...] = (pacc_ref[...] * inv_hw).astype(pool_ref.dtype)


def _pool_kernel(x_ref, o_ref, acc_ref, *, hw, thw, inv_hw, need_mask):
    # tiled mean over the spatial (HW) axis (head pool + stride-2 block fallback)
    b = pl.program_id(0)

    @pl.when(b == 0)
    def _():
        acc_ref[...] = jnp.zeros_like(acc_ref)

    x = x_ref[...].astype(jnp.float32)                        # (N, thw, C)
    if need_mask:
        idx = b * thw + jax.lax.broadcasted_iota(jnp.int32, x.shape, 1)
        x = jnp.where(idx < hw, x, 0.0)
    acc_ref[...] += jnp.sum(x, axis=1)

    @pl.when(b == pl.num_programs(0) - 1)
    def _():
        o_ref[...] = (acc_ref[...] * inv_hw).astype(o_ref.dtype)


def _se_kernel(p_ref, w1_ref, b1_ref, w2_ref, b2_ref, o_ref):
    # squeeze-excite: both FCs fused -> sigmoid gate
    h = jnp.dot(p_ref[...], w1_ref[...], preferred_element_type=jnp.float32) + b1_ref[...]
    h = h * jax.nn.sigmoid(h)                                 # SiLU
    s = jnp.dot(h.astype(jnp.bfloat16), w2_ref[...],
                preferred_element_type=jnp.float32) + b2_ref[...]
    o_ref[...] = jax.nn.sigmoid(s).astype(o_ref.dtype)


# ------------------------------ Pallas wrappers -----------------------------

def matmul3(x, w, scale, bias, act="none", se_scale=None, residual=None,
            out_dtype=jnp.bfloat16):
    """x: (B, M, K) bf16; w: (K, Nout) bf16; scale/bias: (1, Nout) f32 (all pre-padded)."""
    B, M, K = x.shape
    Kw, Nout = w.shape
    assert Kw == K and K % 128 == 0 and Nout % 128 == 0

    Mp = max(M, 8)
    if Mp != M:                                               # only tiny tensors hit this
        x = jnp.pad(x, ((0, 0), (0, Mp - M), (0, 0)))
        if residual is not None:
            residual = jnp.pad(residual, ((0, 0), (0, Mp - M), (0, 0)))

    tm = min(Mp, _TM)
    tn = min(Nout, _TN)
    # grid (B, N-tiles, M-tiles): weight block index is constant while M sweeps
    grid = (B, pl.cdiv(Nout, tn), pl.cdiv(Mp, tm))

    in_specs = [
        pl.BlockSpec((None, tm, K), lambda b, n, m: (b, m, 0)),
        pl.BlockSpec((K, tn), lambda b, n, m: (0, n)),
        pl.BlockSpec((1, tn), lambda b, n, m: (0, n)),
        pl.BlockSpec((1, tn), lambda b, n, m: (0, n)),
    ]
    args = [x, w, scale, bias]
    if se_scale is not None:
        in_specs.append(pl.BlockSpec((None, 1, K), lambda b, n, m: (b, 0, 0)))
        args.append(se_scale.reshape(B, 1, K))
    if residual is not None:
        in_specs.append(pl.BlockSpec((None, tm, tn), lambda b, n, m: (b, m, n)))
        args.append(residual)

    out = pl.pallas_call(
        functools.partial(_mm_kernel, act=act,
                          has_ss=se_scale is not None,
                          has_res=residual is not None),
        grid=grid,
        in_specs=in_specs,
        out_specs=pl.BlockSpec((None, tm, tn), lambda b, n, m: (b, m, n)),
        out_shape=jax.ShapeDtypeStruct((B, Mp, Nout), out_dtype),
        compiler_params=_cp(("parallel", "parallel", "parallel")),
    )(*args)
    if Mp != M:
        out = out[:, :M, :]
    return out


def conv1x1_bn_act(x, w, scale, bias, act, se_scale=None, residual=None):
    # x: (N, H, W, Cp) bf16.  SE gate and residual are fused into the matmul kernel.
    N, H, W, C = x.shape
    r3 = residual.reshape(N, H * W, residual.shape[-1]) if residual is not None else None
    y = matmul3(x.reshape(N, H * W, C), w, scale, bias, act,
                se_scale=se_scale, residual=r3)
    return y.reshape(N, H, W, w.shape[1])


def dwconv_bn_act(x, w, scale, bias, stride, act="silu"):
    """Depthwise kxk conv + folded BN + SiLU.  Returns (y, pooled-or-None); the global
    average pool over the output is fused in for stride-1 layers."""
    N, H, W, C = x.shape
    k = w.shape[0]
    p = (k - 1) // 2
    Ho = (H + 2 * p - k) // stride + 1
    Wo = (W + 2 * p - k) // stride + 1
    Wfull = W + 2 * p - k + 1                                 # stride-1 column positions
    # extra bottom halo so the contiguous (rows*stride)-row slab read stays in-bounds
    extra = max(0, stride * Ho + k - 1 - (H + 2 * p))
    xp = jnp.pad(x, ((0, 0), (p, p + extra), (p, p), (0, 0)))
    Hp, Wp = H + 2 * p + extra, W + 2 * p
    rows = _pick_rows(Ho)
    fuse_pool = stride == 1                                   # Wfull == Wo in this case

    kern = functools.partial(_dw_kernel, k=k, stride=stride, rows=rows, wfull=Wfull,
                             act=act, inv_hw=1.0 / (Ho * Wo), fuse_pool=fuse_pool)
    in_specs = [
        # whole padded per-sample image: index constant across the row axis -> resident
        pl.BlockSpec((None, Hp, Wp, C), lambda n, r: (n, 0, 0, 0)),
        # full (k,k,C) weight + scale/bias stay resident across the entire grid
        pl.BlockSpec((k, k, C), lambda n, r: (0, 0, 0)),
        pl.BlockSpec((1, C), lambda n, r: (0, 0)),
        pl.BlockSpec((1, C), lambda n, r: (0, 0)),
    ]
    grid = (N, Ho // rows)
    # NOTE: row axis is "arbitrary" because the fused-pool accumulator carries across it.
    # TODO(synk): on v7x, split the row axis across cores for batch-1 inference when the
    # pool is not fused.
    if fuse_pool:
        y, pooled = pl.pallas_call(
            kern, grid=grid, in_specs=in_specs,
            out_specs=(pl.BlockSpec((None, rows, Wfull, C), lambda n, r: (n, r, 0, 0)),
                       pl.BlockSpec((None, 1, C), lambda n, r: (n, 0, 0))),
            out_shape=(jax.ShapeDtypeStruct((N, Ho, Wfull, C), jnp.bfloat16),
                       jax.ShapeDtypeStruct((N, 1, C), jnp.bfloat16)),
            scratch_shapes=[pltpu.VMEM((rows, Wfull, C), jnp.float32),
                            pltpu.VMEM((1, C), jnp.float32)],
            compiler_params=_cp(("parallel", "arbitrary")),
        )(xp, w, scale, bias)
        return y, pooled[:, 0, :]

    y = pl.pallas_call(
        kern, grid=grid, in_specs=in_specs,
        out_specs=pl.BlockSpec((None, rows, Wfull, C), lambda n, r: (n, r, 0, 0)),
        out_shape=jax.ShapeDtypeStruct((N, Ho, Wfull, C), jnp.bfloat16),
        scratch_shapes=[pltpu.VMEM((rows, Wfull, C), jnp.float32)],
        compiler_params=_cp(("parallel", "arbitrary")),
    )(xp, w, scale, bias)
    # TODO(synk): fold the column stride into the kernel (strided taps) so the 4
    # stride-2 layers halve their MAC work and keep the fused pool as well.
    y = y[:, :, ::stride, :]
    return y, None


def global_avgpool(x):
    # (N, H, W, Cp) bf16 -> (N, Cp) bf16, tiled reduction over HW
    N, H, W, C = x.shape
    HW = H * W
    x3 = x.reshape(N, HW, C)
    thw = HW if HW <= _THW else _THW
    out = pl.pallas_call(
        functools.partial(_pool_kernel, hw=HW, thw=thw, inv_hw=1.0 / HW,
                          need_mask=(HW % thw) != 0),
        grid=(pl.cdiv(HW, thw),),
        in_specs=[pl.BlockSpec((N, thw, C), lambda b: (0, b, 0))],
        out_specs=pl.BlockSpec((N, C), lambda b: (0, 0)),
        out_shape=jax.ShapeDtypeStruct((N, C), jnp.bfloat16),
        scratch_shapes=[pltpu.VMEM((N, C), jnp.float32)],
        compiler_params=_cp(("arbitrary",)),
    )(x3)
    return out


def se_gate(pooled, w1, b1, w2, b2):
    # pooled: (N, Cp) bf16 -> sigmoid gate (N, Cp) bf16 (both SE FCs fused in one kernel)
    N, C = pooled.shape
    Np = max(N, 8)
    if Np != N:
        pooled = jnp.pad(pooled, ((0, Np - N), (0, 0)))
    Sq = w1.shape[1]
    out = pl.pallas_call(
        _se_kernel,
        grid=(1,),
        in_specs=[
            pl.BlockSpec((Np, C), lambda i: (0, 0)),
            pl.BlockSpec((C, Sq), lambda i: (0, 0)),
            pl.BlockSpec((1, Sq), lambda i: (0, 0)),
            pl.BlockSpec((Sq, C), lambda i: (0, 0)),
            pl.BlockSpec((1, C), lambda i: (0, 0)),
        ],
        out_specs=pl.BlockSpec((Np, C), lambda i: (0, 0)),
        out_shape=jax.ShapeDtypeStruct((Np, C), jnp.bfloat16),
        compiler_params=_cp(("arbitrary",)),
    )(pooled, w1, b1, w2, b2)
    return out[:N]


def stem_conv(x, w, scale, bias):
    # 3x3 / stride-2 stem via bf16 im2col (K=27 padded to 128) + the tiled matmul kernel.
    # TODO(synk): build the stem patches inside a Pallas kernel (row-tap style) to avoid
    # the XLA-side gather/concat pass entirely.
    N, H, W, C = x.shape
    k, stride, p = 3, 2, 1
    Ho = (H + 2 * p - k) // stride + 1
    Wo = (W + 2 * p - k) // stride + 1
    xpad = jnp.pad(x, ((0, 0), (p, p), (p, p), (0, 0))).astype(jnp.bfloat16)
    cols = []
    for i in range(k):
        for j in range(k):
            cols.append(xpad[:, i:i + Ho * stride:stride, j:j + Wo * stride:stride, :])
    patches = jnp.concatenate(cols, axis=-1)                  # (N, Ho, Wo, 27) bf16
    Kp = w.shape[0]
    patches = jnp.pad(patches, ((0, 0), (0, 0), (0, 0), (0, Kp - k * k * C)))
    patches = patches.reshape(N, Ho * Wo, Kp)
    y = matmul3(patches, w, scale, bias, act="silu")
    return y.reshape(N, Ho, Wo, w.shape[1])


# --------------------------- EfficientNet-B3 model --------------------------

# (expand_ratio, kernel, stride, in_ch, out_ch, num_layers) — B3 (width 1.2, depth 1.4)
_STAGES = [
    (1, 3, 1, 40, 24, 2),
    (6, 3, 2, 24, 32, 3),
    (6, 5, 2, 32, 48, 3),
    (6, 3, 2, 48, 96, 5),
    (6, 5, 1, 96, 136, 5),
    (6, 5, 2, 136, 232, 6),
    (6, 3, 1, 232, 384, 2),
]
_STEM_OUT = 40
_HEAD_IN, _HEAD_OUT = 384, 1536
_NUM_CLASSES = 1000


def mbconv(x, bp):
    inp = x
    h = x
    if "expand_w" in bp:
        h = conv1x1_bn_act(h, bp["expand_w"], bp["expand_s"], bp["expand_b"], "silu")
    h, pooled = dwconv_bn_act(h, bp["dw_w"], bp["dw_s"], bp["dw_b"], bp["stride"],
                              act="silu")
    if pooled is None:                                        # stride-2 fallback path
        pooled = global_avgpool(h)
    gate = se_gate(pooled, bp["se_w1"], bp["se_b1"], bp["se_w2"], bp["se_b2"])
    # SE gate multiply and residual add are fused into the projection matmul kernel.
    # TODO(synk): StochasticDepth is identity at inference, so plain residual add.
    out = conv1x1_bn_act(h, bp["proj_w"], bp["proj_s"], bp["proj_b"], "none",
                         se_scale=gate, residual=inp if bp["use_res"] else None)
    return out


def efficientnet_b3_forward(x_nchw, params):
    x = jnp.transpose(x_nchw, (0, 2, 3, 1)).astype(jnp.float32)      # NCHW -> NHWC
    x = stem_conv(x, params["stem_w"], params["stem_s"], params["stem_b"])
    for bp in params["blocks"]:
        x = mbconv(x, bp)
    x = conv1x1_bn_act(x, params["head_w"], params["head_s"], params["head_b"], "silu")
    pooled = global_avgpool(x)                                        # (N, 1536) bf16
    # TODO(synk): Dropout(p=0.3) in the classifier is identity at inference.
    logits = matmul3(pooled[None], params["fc_w"], params["fc_s"], params["fc_b"],
                     act="none", out_dtype=jnp.float32)
    return logits[0, :, :_NUM_CLASSES]                                # raw (N, 1000) logits


# ------------------------- deterministic synthetic init ----------------------

class _Rng:
    def __init__(self, key):
        self.key, self.i = key, 0

    def _next(self):
        self.i += 1
        return jax.random.fold_in(self.key, self.i)

    def conv(self, shape):
        fan_in = int(math.prod(shape[:-1]))
        return math.sqrt(2.0 / fan_in) * jax.random.normal(self._next(), shape, jnp.float32)

    def dw(self, shape):  # (k, k, C)
        fan_in = shape[0] * shape[1]
        return math.sqrt(2.0 / fan_in) * jax.random.normal(self._next(), shape, jnp.float32)

    def linear(self, shape):
        fan_in = shape[0]
        return math.sqrt(1.0 / fan_in) * jax.random.normal(self._next(), shape, jnp.float32)

    def bias(self, n):
        return 0.02 * jax.random.normal(self._next(), (n,), jnp.float32)

    def bn(self, n):  # folded BatchNorm -> (scale, bias)
        s = 1.0 + 0.05 * jax.random.normal(self._next(), (n,), jnp.float32)
        b = 0.02 * jax.random.normal(self._next(), (n,), jnp.float32)
        return s, b


def _pad_mat(a, rp, cp, dtype=jnp.bfloat16):
    r, c = a.shape
    return jnp.zeros((rp, cp), jnp.float32).at[:r, :c].set(a).astype(dtype)


def _pad_row(a, cp):
    return jnp.zeros((1, cp), jnp.float32).at[0, :a.shape[0]].set(a)


def make_params(key):
    # All weights are padded once here to the persistent channel-padded layout
    # (multiples of 128, zeros in padded rows/cols) so no per-call padding is needed.
    # TODO(synk): keep the first two stages unpadded in HBM (C=24/32/40) to cut their
    # HBM traffic 3-5x on large spatial maps; padding is uniform here for simplicity.
    rng = _Rng(key)
    P = {}
    stem_cp = _rup(_STEM_OUT, 128)
    P["stem_w"] = _pad_mat(rng.conv((3, 3, 3, _STEM_OUT)).reshape(27, _STEM_OUT), 128, stem_cp)
    ss, sb = rng.bn(_STEM_OUT)
    P["stem_s"], P["stem_b"] = _pad_row(ss, stem_cp), _pad_row(sb, stem_cp)

    blocks = []
    for (exp, k, s, cin0, cout, n_layers) in _STAGES:
        for layer in range(n_layers):
            cin = cin0 if layer == 0 else cout
            stride = s if layer == 0 else 1
            ce = cin * exp
            sq = max(1, cin // 4)
            cin_p, ce_p = _rup(cin, 128), _rup(ce, 128)
            cout_p, sq_p = _rup(cout, 128), _rup(sq, 128)
            bp = {"kernel": k, "stride": stride, "use_res": stride == 1 and cin == cout}
            if ce != cin:
                bp["expand_w"] = _pad_mat(rng.conv((cin, ce)), cin_p, ce_p)
                es, eb = rng.bn(ce)
                bp["expand_s"], bp["expand_b"] = _pad_row(es, ce_p), _pad_row(eb, ce_p)
            dw = rng.dw((k, k, ce))
            bp["dw_w"] = jnp.zeros((k, k, ce_p), jnp.float32).at[:, :, :ce].set(dw)
            ds, db = rng.bn(ce)
            bp["dw_s"], bp["dw_b"] = _pad_row(ds, ce_p), _pad_row(db, ce_p)
            bp["se_w1"] = _pad_mat(rng.conv((ce, sq)), ce_p, sq_p)
            bp["se_b1"] = _pad_row(rng.bias(sq), sq_p)
            bp["se_w2"] = _pad_mat(rng.conv((sq, ce)), sq_p, ce_p)
            bp["se_b2"] = _pad_row(rng.bias(ce), ce_p)
            bp["proj_w"] = _pad_mat(rng.conv((ce, cout)), ce_p, cout_p)
            ps, pb = rng.bn(cout)
            bp["proj_s"], bp["proj_b"] = _pad_row(ps, cout_p), _pad_row(pb, cout_p)
            blocks.append(bp)
    P["blocks"] = blocks

    head_ip, head_op = _rup(_HEAD_IN, 128), _rup(_HEAD_OUT, 128)
    P["head_w"] = _pad_mat(rng.conv((_HEAD_IN, _HEAD_OUT)), head_ip, head_op)
    hs, hb = rng.bn(_HEAD_OUT)
    P["head_s"], P["head_b"] = _pad_row(hs, head_op), _pad_row(hb, head_op)

    ncp = _rup(_NUM_CLASSES, 128)
    P["fc_w"] = _pad_mat(rng.linear((_HEAD_OUT, _NUM_CLASSES)), head_op, ncp)
    P["fc_s"] = _pad_row(jnp.ones((_NUM_CLASSES,), jnp.float32), ncp)
    P["fc_b"] = _pad_row(rng.bias(_NUM_CLASSES), ncp)
    return P


# ------------------------------------ main -----------------------------------

if __name__ == "__main__":
    key = jax.random.PRNGKey(0)
    params = make_params(jax.random.fold_in(key, 1))
    # Small input consistent with the module (NCHW, 3 input channels).
    x = jax.random.normal(jax.random.fold_in(key, 2), (2, 3, 32, 32), jnp.float32)
    out = efficientnet_b3_forward(x, params)
    out = jax.block_until_ready(out)
    assert out.shape == (2, _NUM_CLASSES)
    assert bool(jnp.all(jnp.isfinite(out)))
    print("KERNEL_OK")
</pallas_src>

<mosaic_0001>
module attributes {stable_mosaic.version = 11 : i64} {
  func.func @_mm_kernel(%arg0: i32, %arg1: i32, %arg2: i32, %arg3: memref<1x256x128xbf16, #tpu.memory_space<vmem>>, %arg4: memref<128x128xbf16, #tpu.memory_space<vmem>>, %arg5: memref<1x128xf32, #tpu.memory_space<vmem>>, %arg6: memref<1x128xf32, #tpu.memory_space<vmem>>, %arg7: memref<1x256x128xbf16, #tpu.memory_space<vmem>>) attributes {dimension_semantics = [#tpu.dimension_semantics<parallel>, #tpu.dimension_semantics<parallel>, #tpu.dimension_semantics<parallel>], iteration_bounds = array<i64: 2, 1, 1>, scalar_prefetch = 0 : i64, scratch_operands = 0 : i64, tpu.core_type = #tpu.core_type<tc>, window_params = [{transform_indices = @transform_0, window_bounds = array<i64: 1, 256, 128>}, {transform_indices = @transform_1, window_bounds = array<i64: 128, 128>}, {transform_indices = @transform_2, window_bounds = array<i64: 1, 128>}, {transform_indices = @transform_3, window_bounds = array<i64: 1, 128>}, {transform_indices = @transform_4, window_bounds = array<i64: 1, 256, 128>}]} {
    %c0 = arith.constant 0 : index
    %c0_0 = arith.constant 0 : index
    %c0_1 = arith.constant 0 : index
    %0 = vector.load %arg3[%c0, %c0_0, %c0_1] : memref<1x256x128xbf16, #tpu.memory_space<vmem>>, vector<1x256x128xbf16>
    %1 = vector.shape_cast %0 : vector<1x256x128xbf16> to vector<256x128xbf16>
    %c0_2 = arith.constant 0 : index
    %c0_3 = arith.constant 0 : index
    %2 = vector.load %arg4[%c0_2, %c0_3] : memref<128x128xbf16, #tpu.memory_space<vmem>>, vector<128x128xbf16>
    %cst = arith.constant dense<0.000000e+00> : vector<256x128xf32>
    %3 = tpu.matmul %1, %2, %cst {dimension_numbers = #tpu.dot_dimension_numbers<[1], [0], [0], [1], [0, 0, 1, 1], [], []>} : vector<256x128xbf16>, vector<128x128xbf16>, vector<256x128xf32> -> vector<256x128xf32>
    %c0_4 = arith.constant 0 : index
    %c0_5 = arith.constant 0 : index
    %4 = vector.load %arg5[%c0_4, %c0_5] : memref<1x128xf32, #tpu.memory_space<vmem>>, vector<1x128xf32>
    %5 = vector.broadcast %4 : vector<1x128xf32> to vector<256x128xf32>
    %6 = arith.mulf %3, %5 : vector<256x128xf32>
    %c0_6 = arith.constant 0 : index
    %c0_7 = arith.constant 0 : index
    %7 = vector.load %arg6[%c0_6, %c0_7] : memref<1x128xf32, #tpu.memory_space<vmem>>, vector<1x128xf32>
    %8 = vector.broadcast %7 : vector<1x128xf32> to vector<256x128xf32>
    %9 = arith.addf %6, %8 : vector<256x128xf32>
    %10 = arith.negf %9 : vector<256x128xf32>
    %11 = math.exp %10 : vector<256x128xf32>
    %cst_8 = arith.constant 1.000000e+00 : f32
    %12 = vector.broadcast %cst_8 : f32 to vector<256x128xf32>
    %13 = arith.addf %12, %11 : vector<256x128xf32>
    %14 = arith.divf %12, %13 : vector<256x128xf32>
    %15 = arith.mulf %9, %14 : vector<256x128xf32>
    %16 = arith.truncf %15 : vector<256x128xf32> to vector<256x128xbf16>
    %c0_9 = arith.constant 0 : index
    %c0_10 = arith.constant 0 : index
    %c0_11 = arith.constant 0 : index
    %17 = vector.load %arg7[%c0_9, %c0_10, %c0_11] : memref<1x256x128xbf16, #tpu.memory_space<vmem>>, vector<1x256x128xbf16>
    %18 = vector.shape_cast %17 : vector<1x256x128xbf16> to vector<256x128xbf16>
    %19 = vector.shape_cast %16 : vector<256x128xbf16> to vector<1x256x128xbf16>
    tpu.vector_store %arg7[%c0_9, %c0_10, %c0_11], %19 {strides = array<i32>} : memref<1x256x128xbf16, #tpu.memory_space<vmem>>, vector<1x256x128xbf16>,
    return
  }
  func.func @transform_0(%arg0: i32, %arg1: i32, %arg2: i32) -> (i32, i32, i32) {
    %c0_i32 = arith.constant 0 : i32
    %c0_i32_0 = arith.constant 0 : i32
    return %arg0, %arg2, %c0_i32 : i32, i32, i32
  }
  func.func @transform_1(%arg0: i32, %arg1: i32, %arg2: i32) -> (i32, i32) {
    %c0_i32 = arith.constant 0 : i32
    %c0_i32_0 = arith.constant 0 : i32
    return %c0_i32, %arg1 : i32, i32
  }
  func.func @transform_2(%arg0: i32, %arg1: i32, %arg2: i32) -> (i32, i32) {
    %c0_i32 = arith.constant 0 : i32
    %c0_i32_0 = arith.constant 0 : i32
    return %c0_i32, %arg1 : i32, i32
  }
  func.func @transform_3(%arg0: i32, %arg1: i32, %arg2: i32) -> (i32, i32) {
    %c0_i32 = arith.constant 0 : i32
    %c0_i32_0 = arith.constant 0 : i32
    return %c0_i32, %arg1 : i32, i32
  }
  func.func @transform_4(%arg0: i32, %arg1: i32, %arg2: i32) -> (i32, i32, i32) {
    %c0_i32 = arith.constant 0 : i32
    return %arg0, %arg2, %arg1 : i32, i32, i32
  }
}

</mosaic_0001>

<llo_original>
// kernel: tpu_custom_call.1
$region0: #{tpu_custom_call.1}
  #allocation0 [shape = 'u32[]', space=smem, size = 0x4, offset = 0x4, fixed_abs, tag = 'smem constant byte address 0x4 - core index']
  #allocation1 [shape = 'u32[72,128]{1,0:T(1,128)}', space=vmem, size = 0x9000, scoped, tag = 'internal scratch']
  %s0 = inlined_call_operand.hbm [shape: bf16[2,256,128], index: 0, kind: input, shape index: {}]
  %s1 = inlined_call_operand.hbm [shape: bf16[128,128], index: 1, kind: input, shape index: {}]
  %s2 = inlined_call_operand.vmem [shape: f32[1,128], index: 2, kind: input, shape index: {}]
  %s3 = inlined_call_operand.vmem [shape: f32[1,128], index: 3, kind: input, shape index: {}]
  %s4 = inlined_call_operand.hbm [shape: bf16[2,256,128], index: 4, kind: output, shape index: {}]
  %s5 = sld [smem:[#allocation0]]
  $region57: #{tpu_custom_call.1} parent=0
    _
  %s7 = ssub.s32 1, %s5
  %s8 = scalar_select 0, %s7, %s5
  $region1: #{tpu_custom_call.1} parent=0
    #allocation2 [shape = 'u8[131072]{0}', space=vmem, size = 0x20000, scoped, tag = 'input window, operand 0']
    #allocation3 [shape = 's32[2]{0}', space=sflag, size = 0x8, scoped, tag = 'scoped memory for tpu_custom_call.1']
    #allocation4 [shape = 's32[2]{0}', space=sflag, size = 0x8, scoped, tag = 'scoped memory for tpu_custom_call.1']
    #allocation5 [shape = 'u8[32768]{0}', space=vmem, size = 0x8000, scoped, tag = 'input window, operand 1, single buffered']
    #allocation6 [shape = 's32[1]{0}', space=sflag, size = 0x4, scoped, tag = 'scoped memory for tpu_custom_call.1']
    #allocation7 [shape = 'u8[131072]{0}', space=vmem, size = 0x20000, scoped, tag = 'output window, operand 0']
    %9 = vsyncpa [#allocation3], 0
    %s10 = scalar_lea.sflag [#allocation3], 1
    %11 = vsyncpa %s10, 0
    %12 = vsyncpa [#allocation6], 0
    %13 = vsyncpa [#allocation4], 0
    %s14 = scalar_lea.sflag [#allocation4], 1
    %15 = vsyncpa %s14, 0
    loop: start=0, step=1, limit=4
    $region2: #{tpu_custom_call.1} parent=1 // loop_pre_header
      _
    $region3: #{tpu_custom_call.1} parent=1 // loop_header
      %s17 = sphi 0, %s21
      %p18 = scmp.ge.s32.totalorder %s17, 4
      %s24 = sphi 0, %s43
      %s25 = sphi 0, %s39
      %s26 = sphi 0, %s35
      %s27 = sphi 0, %s24
      %s28 = sphi 0, %s25
      %s29 = sphi 0, %s26
      %s30 = sphi 0, %s27
      %s31 = sphi 0, %s28
      %s32 = sphi 0, %s29
      %s48 = sphi 0, %s50
      %s51 = sphi 0, %s48
      %s52 = sphi 0, %s51
      %s68 = sphi 0, %s52
      %s74 = sphi 0, %s76
      %s77 = sphi 0, %s74
      %s78 = sphi 0, %s77
      %s94 = sphi 0, %s78
      %s100 = sphi 0, %s102
      %s103 = sphi 0, %s100
      %s104 = sphi 0, %s103
      %s120 = sphi 0, %s104
      %s126 = sphi 0, %s128
      %s129 = sphi 0, %s126
      %s130 = sphi 0, %s129
      %s146 = sphi 0, %s130
      %s156 = sphi 0, %s158
      %s159 = sphi 0, %s156
      %s160 = sphi 0, %s159
      %s176 = sphi 0, %s160
    $region4: #{tpu_custom_call.1} parent=1 // loop_header_branch
      %20 = sbr.rel (%p18) target = $region8
    $region5: #{tpu_custom_call.1} parent=1 // loop_body
      %s22 = ssub.s32 %s17, 1
      %s23 = ssub.s32 %s17, 2
      %s33 = sadd.s32 1, %s26
      %p34 = scmp.ge.s32.totalorder %s33, 1
      %s35 = scalar_select %p34, 0, %s33
      %s36 = sadd.s32 1, %s25
      %s37 = scalar_select %p34, %s36, %s25
      %p38 = scmp.ge.s32.totalorder %s37, 1
      %s39 = scalar_select %p38, 0, %s37
      %s40 = sadd.s32 1, %s24
      %s41 = scalar_select %p38, %s40, %s24
      %p42 = scmp.ge.s32.totalorder %s41, 2
      %s43 = scalar_select %p42, 0, %s41
      %s44 = ssub.s32 %s24, %s43
      %s45 = ssub.s32 %s26, %s35
      %s46 = sor.u32 %s44, %s45
      %p47 = scmp.eq.s32.totalorder %s46, 0
      %s49 = sadd.s32 %s48, 1
      %s50 = scalar_select %p47, %s48, %s49
      %p53 = pneg %p47
      %p54 = scmp.eq.s32.totalorder %s17, 1
      %p55 = por %p53, %p54
      %p56 = scmp.ne.s32.totalorder %s48, %s51
      %p57 = scmp.eq.s32.totalorder %s17, 0
      %p58 = por %p56, %p57
      %p59 = scmp.ne.s32.totalorder %s48, %s51
      %p60 = scmp.eq.s32.totalorder %s22, 1
      %p61 = por %p59, %p60
      %p62 = scmp.ne.s32.totalorder %s51, %s52
      %p63 = scmp.eq.s32.totalorder %s22, 0
      %p64 = por %p62, %p63
      %p65 = scmp.ne.s32.totalorder %s51, %s52
      %p66 = scmp.eq.s32.totalorder %s23, 1
      %p67 = por %p65, %p66
      %p69 = scmp.ne.s32.totalorder %s52, %s68
      %p70 = scmp.eq.s32.totalorder %s23, 0
      %p71 = por %p69, %p70
      %s72 = ssub.s32 %s25, %s39
      %p73 = scmp.eq.s32.totalorder %s72, 0
      %s75 = sadd.s32 %s74, 1
      %s76 = scalar_select %p73, %s74, %s75
      %p79 = pneg %p73
      %p80 = scmp.eq.s32.totalorder %s17, 1
      %p81 = por %p79, %p80
      %p82 = scmp.ne.s32.totalorder %s74, %s77
      %p83 = scmp.eq.s32.totalorder %s17, 0
      %p84 = por %p82, %p83
      %p85 = scmp.ne.s32.totalorder %s74, %s77
      %p86 = scmp.eq.s32.totalorder %s22, 1
      %p87 = por %p85, %p86
      %p88 = scmp.ne.s32.totalorder %s77, %s78
      %p89 = scmp.eq.s32.totalorder %s22, 0
      %p90 = por %p88, %p89
      %p91 = scmp.ne.s32.totalorder %s77, %s78
      %p92 = scmp.eq.s32.totalorder %s23, 1
      %p93 = por %p91, %p92
      %p95 = scmp.ne.s32.totalorder %s78, %s94
      %p96 = scmp.eq.s32.totalorder %s23, 0
      %p97 = por %p95, %p96
      %s98 = ssub.s32 %s25, %s39
      %p99 = scmp.eq.s32.totalorder %s98, 0
      %s101 = sadd.s32 %s100, 1
      %s102 = scalar_select %p99, %s100, %s101
      %p105 = pneg %p99
      %p106 = scmp.eq.s32.totalorder %s17, 1
      %p107 = por %p105, %p106
      %p108 = scmp.ne.s32.totalorder %s100, %s103
      %p109 = scmp.eq.s32.totalorder %s17, 0
      %p110 = por %p108, %p109
      %p111 = scmp.ne.s32.totalorder %s100, %s103
      %p112 = scmp.eq.s32.totalorder %s22, 1
      %p113 = por %p111, %p112
      %p114 = scmp.ne.s32.totalorder %s103, %s104
      %p115 = scmp.eq.s32.totalorder %s22, 0
      %p116 = por %p114, %p115
      %p117 = scmp.ne.s32.totalorder %s103, %s104
      %p118 = scmp.eq.s32.totalorder %s23, 1
      %p119 = por %p117, %p118
      %p121 = scmp.ne.s32.totalorder %s104, %s120
      %p122 = scmp.eq.s32.totalorder %s23, 0
      %p123 = por %p121, %p122
      %s124 = ssub.s32 %s25, %s39
      %p125 = scmp.eq.s32.totalorder %s124, 0
      %s127 = sadd.s32 %s126, 1
      %s128 = scalar_select %p125, %s126, %s127
      %p131 = pneg %p125
      %p132 = scmp.eq.s32.totalorder %s17, 1
      %p133 = por %p131, %p132
      %p134 = scmp.ne.s32.totalorder %s126, %s129
      %p135 = scmp.eq.s32.totalorder %s17, 0
      %p136 = por %p134, %p135
      %p137 = scmp.ne.s32.totalorder %s126, %s129
      %p138 = scmp.eq.s32.totalorder %s22, 1
      %p139 = por %p137, %p138
      %p140 = scmp.ne.s32.totalorder %s129, %s130
      %p141 = scmp.eq.s32.totalorder %s22, 0
      %p142 = por %p140, %p141
      %p143 = scmp.ne.s32.totalorder %s129, %s130
      %p144 = scmp.eq.s32.totalorder %s23, 1
      %p145 = por %p143, %p144
      %p147 = scmp.ne.s32.totalorder %s130, %s146
      %p148 = scmp.eq.s32.totalorder %s23, 0
      %p149 = por %p147, %p148
      %s150 = ssub.s32 %s24, %s43
      %s151 = ssub.s32 %s26, %s35
      %s152 = sor.u32 %s150, %s151
      %s153 = ssub.s32 %s25, %s39
      %s154 = sor.u32 %s152, %s153
      %p155 = scmp.eq.s32.totalorder %s154, 0
      %s157 = sadd.s32 %s156, 1
      %s158 = scalar_select %p155, %s156, %s157
      %p161 = pneg %p155
      %p162 = scmp.eq.s32.totalorder %s17, 1
      %p163 = por %p161, %p162
      %p164 = scmp.ne.s32.totalorder %s156, %s159
      %p165 = scmp.eq.s32.totalorder %s17, 0
      %p166 = por %p164, %p165
      %p167 = scmp.ne.s32.totalorder %s156, %s159
      %p168 = scmp.eq.s32.totalorder %s22, 1
      %p169 = por %p167, %p168
      %p170 = scmp.ne.s32.totalorder %s159, %s160
      %p171 = scmp.eq.s32.totalorder %s22, 0
      %p172 = por %p170, %p171
      %p173 = scmp.ne.s32.totalorder %s159, %s160
      %p174 = scmp.eq.s32.totalorder %s23, 1
      %p175 = por %p173, %p174
      %p177 = scmp.ne.s32.totalorder %s160, %s176
      %p178 = scmp.eq.s32.totalorder %s23, 0
      %p179 = por %p177, %p178
      %p180 = scmp.le.s32.totalorder 1, %s17
      %p181 = scmp.lt.s32.totalorder %s17, 3
      %p182 = pnand %p180, %p181
      %p183 = pneg %p182
      // Predicated region
      $region9: #{tpu_custom_call.1} parent=5 // pred_check
        _
      $region10: #{tpu_custom_call.1} parent=5 // pred_check_branch
        %185 = sbr.rel (%p182) target = $region12
      $region11: #{tpu_custom_call.1} parent=5 // pred_region
        %s186 = ssub.s32 %s17, 1
        // Predicated region
        $region13: #{tpu_custom_call.1} parent=11 // pred_check
          %p187 = pneg %p90
        $region14: #{tpu_custom_call.1} parent=11 // pred_check_branch
          %189 = sbr.rel (%p187) target = $region16
        $region15: #{tpu_custom_call.1} parent=11 // pred_region
          %191 = vsyncadd [#allocation6], 0
          %s192 = smul.addr %s28, 4
          %s193 = scalar_lea.hbm %s1, %s192
          %s194 = sshll.u32 %s193, 4
          %s195 = int_to_ptr.hbm [resolvable:$true] %s194
          %s196 = sshll.u32 [#allocation5], 4
          %s197 = int_to_ptr.vmem [resolvable:$true] %s196
          %202 = dma.hbm_to_vmem [thread:$0]  %s195, 1024, %s197, [#allocation6], 64, 64, 4
        $region16: #{tpu_custom_call.1} parent=11 // pred_fallthru
          _
        // Predicated region
        $region17: #{tpu_custom_call.1} parent=11 // pred_check
          %p203 = pneg %p116
        $region18: #{tpu_custom_call.1} parent=11 // pred_check_branch
          %205 = sbr.rel (%p203) target = $region20
        $region19: #{tpu_custom_call.1} parent=11 // pred_region
          %p206 = scmp.lt.s32.totalorder %s28, 0
          %s207 = scalar_select %p206, %s28, 0
          %s208 = scalar_lea.vmem %s2, %s207
        $region20: #{tpu_custom_call.1} parent=11 // pred_fallthru
          _
        // Predicated region
        $region21: #{tpu_custom_call.1} parent=11 // pred_check
          %p209 = pneg %p142
        $region22: #{tpu_custom_call.1} parent=11 // pred_check_branch
          %211 = sbr.rel (%p209) target = $region24
        $region23: #{tpu_custom_call.1} parent=11 // pred_region
          %p212 = scmp.lt.s32.totalorder %s28, 0
          %s213 = scalar_select %p212, %s28, 0
          %s214 = scalar_lea.vmem %s3, %s213
        $region24: #{tpu_custom_call.1} parent=11 // pred_fallthru
          _
      $region12: #{tpu_custom_call.1} parent=5 // pred_fallthru
        _
      %p215 = scmp.lt.s32.totalorder %s17, 2
      // Predicated region
      $region25: #{tpu_custom_call.1} parent=5 // pred_check
        %p216 = pneg %p215
      $region26: #{tpu_custom_call.1} parent=5 // pred_check_branch
        %218 = sbr.rel (%p216) target = $region28
      $region27: #{tpu_custom_call.1} parent=5 // pred_region
        // Predicated region
        $region29: #{tpu_custom_call.1} parent=27 // pred_check
          %p219 = pneg %p58
        $region30: #{tpu_custom_call.1} parent=27 // pred_check_branch
          %221 = sbr.rel (%p219) target = $region32
        $region31: #{tpu_custom_call.1} parent=27 // pred_region
          %s222 = sand.u32 %s48, 1
          %s223 = scalar_lea.sflag [#allocation3], %s222
          %s224 = sand.u32 %s48, 1
          %s225 = smul.addr %s224, 128
          %s226 = scalar_lea.vmem [#allocation2], %s225
          %s227 = smul.u32 32, %s26
          %229 = vsyncadd %s223, 0
          %s230 = smul.addr %s24, 32
          %s231 = sadd.s32 %s227, %s230
          %s232 = smul.addr %s231, 4
          %s233 = scalar_lea.hbm %s0, %s232
          %s234 = sshll.u32 %s233, 4
          %s235 = int_to_ptr.hbm [resolvable:$true] %s234
          %s236 = sshll.u32 %s226, 4
          %s237 = int_to_ptr.vmem [resolvable:$true] %s236
          %242 = dma.hbm_to_vmem [thread:$0]  %s235, 2048, %s237, %s223, 64, 64, 4
        $region32: #{tpu_custom_call.1} parent=27 // pred_fallthru
          _
      $region28: #{tpu_custom_call.1} parent=5 // pred_fallthru
        _
      %p243 = scmp.le.s32.totalorder 1, %s17
      %p244 = scmp.lt.s32.totalorder %s17, 3
      %p245 = pnand %p243, %p244
      %p246 = pneg %p245
      // Predicated region
      $region33: #{tpu_custom_call.1} parent=5 // pred_check
        _
      $region34: #{tpu_custom_call.1} parent=5 // pred_check_branch
        %248 = sbr.rel (%p245) target = $region36
      $region35: #{tpu_custom_call.1} parent=5 // pred_region
        %s249 = ssub.s32 %s17, 1
        %s250 = sand.u32 %s51, 1
        %s251 = scalar_lea.sflag [#allocation3], %s250
        %s252 = sand.u32 %s51, 1
        %s253 = smul.addr %s252, 128
        %s254 = scalar_lea.vmem [#allocation2], %s253
        // Predicated region
        $region37: #{tpu_custom_call.1} parent=35 // pred_check
          %p255 = pneg %p64
        $region38: #{tpu_custom_call.1} parent=35 // pred_check_branch
          %257 = sbr.rel (%p255) target = $region40
        $region39: #{tpu_custom_call.1} parent=35 // pred_region
          %259 = dma.done %s251, 2048
        $region40: #{tpu_custom_call.1} parent=35 // pred_fallthru
          _
        // Predicated region
        $region41: #{tpu_custom_call.1} parent=35 // pred_check
          %p260 = pneg %p90
        $region42: #{tpu_custom_call.1} parent=35 // pred_check_branch
          %262 = sbr.rel (%p260) target = $region44
        $region43: #{tpu_custom_call.1} parent=35 // pred_region
          %264 = dma.done [#allocation6], 1024
        $region44: #{tpu_custom_call.1} parent=35 // pred_fallthru
          _
        %s265 = sand.u32 %s51, 1
        %s266 = scalar_lea.sflag [#allocation3], %s265
        %s267 = sand.u32 %s51, 1
        %s268 = smul.addr %s267, 128
        %s269 = scalar_lea.vmem [#allocation2], %s268
        %p270 = pneg %p64
        %p271 = pneg %p61
        %p272 = pneg %p90
        %p273 = pneg %p87
        %p274 = scmp.lt.s32.totalorder %s28, 0
        %s275 = scalar_select %p274, %s28, 0
        %s276 = scalar_lea.vmem %s2, %s275
        %p277 = pneg %p116
        %p278 = pneg %p113
        %p279 = scmp.lt.s32.totalorder %s28, 0
        %s280 = scalar_select %p279, %s28, 0
        %s281 = scalar_lea.vmem %s3, %s280
        %p282 = pneg %p142
        %p283 = pneg %p139
        %p284 = pneg %p172
        %p285 = pneg %p169
        %s286 = sand.u32 %s159, 1
        %s287 = scalar_lea.sflag [#allocation4], %s286
        %s288 = sand.u32 %s159, 1
        %s289 = smul.addr %s288, 128
        %s290 = scalar_lea.vmem [#allocation7], %s289
        %s291 = smul.u32 32, %s29
        %p292 = scmp.lt.s32.totalorder %s28, 0
        %s293 = scalar_select %p292, %s28, 0
        %s294 = scalar_lea.vmem %s2, %s293
        %p295 = scmp.lt.s32.totalorder %s28, 0
        %s296 = scalar_select %p295, %s28, 0
        %s297 = scalar_lea.vmem %s3, %s296
        %s298 = smul.u32 32, %s29
        %v299 = vld [vmem:[%s254] sm:$0xf]
        %v300 = vld [vmem:[%s254 + $0x4] sm:$0xf]
        %v301 = vld [vmem:[%s254 + $0x8] sm:$0xf]
        %v302 = vld [vmem:[%s254 + $0xc] sm:$0xf]
        %v303 = vld [vmem:[%s254 + $0x10] sm:$0xf]
        %v304 = vld [vmem:[%s254 + $0x14] sm:$0xf]
        %v305 = vld [vmem:[%s254 + $0x18] sm:$0xf]
        %v306 = vld [vmem:[%s254 + $0x1c] sm:$0xf]
        %v307 = vld [vmem:[%s254 + $0x20] sm:$0xf]
        %v308 = vld [vmem:[%s254 + $0x24] sm:$0xf]
        %v309 = vld [vmem:[%s254 + $0x28] sm:$0xf]
        %v310 = vld [vmem:[%s254 + $0x2c] sm:$0xf]
        %v311 = vld [vmem:[%s254 + $0x30] sm:$0xf]
        %v312 = vld [vmem:[%s254 + $0x34] sm:$0xf]
        %v313 = vld [vmem:[%s254 + $0x38] sm:$0xf]
        %v314 = vld [vmem:[%s254 + $0x3c] sm:$0xf]
        %v315 = vld [vmem:[%s254 + $0x40] sm:$0xf]
        %v316 = vld [vmem:[%s254 + $0x44] sm:$0xf]
        %v317 = vld [vmem:[%s254 + $0x48] sm:$0xf]
        %v318 = vld [vmem:[%s254 + $0x4c] sm:$0xf]
        %v319 = vld [vmem:[%s254 + $0x50] sm:$0xf]
        %v320 = vld [vmem:[%s254 + $0x54] sm:$0xf]
        %v321 = vld [vmem:[%s254 + $0x58] sm:$0xf]
        %v322 = vld [vmem:[%s254 + $0x5c] sm:$0xf]
        %v323 = vld [vmem:[%s254 + $0x60] sm:$0xf]
        %v324 = vld [vmem:[%s254 + $0x64] sm:$0xf]
        %v325 = vld [vmem:[%s254 + $0x68] sm:$0xf]
        %v326 = vld [vmem:[%s254 + $0x6c] sm:$0xf]
        %v327 = vld [vmem:[%s254 + $0x70] sm:$0xf]
        %v328 = vld [vmem:[%s254 + $0x74] sm:$0xf]
        %v329 = vld [vmem:[%s254 + $0x78] sm:$0xf]
        %v330 = vld [vmem:[%s254 + $0x7c] sm:$0xf]
        %v331 = vld [vmem:[#allocation5] sm:$0xf]
        %v332 = vld [vmem:[#allocation5 + $0x4] sm:$0xf]
        %v333 = vld [vmem:[#allocation5 + $0x8] sm:$0xf]
        %v334 = vld [vmem:[#allocation5 + $0xc] sm:$0xf]
        %v335 = vld [vmem:[#allocation5 + $0x10] sm:$0xf]
        %v336 = vld [vmem:[#allocation5 + $0x14] sm:$0xf]
        %v337 = vld [vmem:[#allocation5 + $0x18] sm:$0xf]
        %v338 = vld [vmem:[#allocation5 + $0x1c] sm:$0xf]
        %v339 = vld [vmem:[#allocation5 + $0x20] sm:$0xf]
        %v340 = vld [vmem:[#allocation5 + $0x24] sm:$0xf]
        %v341 = vld [vmem:[#allocation5 + $0x28] sm:$0xf]
        %v342 = vld [vmem:[#allocation5 + $0x2c] sm:$0xf]
        %v343 = vld [vmem:[#allocation5 + $0x30] sm:$0xf]
        %v344 = vld [vmem:[#allocation5 + $0x34] sm:$0xf]
        %v345 = vld [vmem:[#allocation5 + $0x38] sm:$0xf]
        %v346 = vld [vmem:[#allocation5 + $0x3c] sm:$0xf]
        %v379 = vunpack.c.l.b16 %v299
        %v380 = vunpack.c.l.b16 %v300
        %v381 = vunpack.c.l.b16 %v301
        %v382 = vunpack.c.l.b16 %v302
        %v383 = vunpack.c.l.b16 %v303
        %v384 = vunpack.c.l.b16 %v304
        %v385 = vunpack.c.l.b16 %v305
        %v386 = vunpack.c.l.b16 %v306
        %v387 = vunpack.c.l.b16 %v307
        %v388 = vunpack.c.l.b16 %v308
        %v389 = vunpack.c.l.b16 %v309
        %v390 = vunpack.c.l.b16 %v310
        %v391 = vunpack.c.l.b16 %v311
        %v392 = vunpack.c.l.b16 %v312
        %v393 = vunpack.c.l.b16 %v313
        %v394 = vunpack.c.l.b16 %v314
        %v395 = vunpack.c.l.b16 %v315
        %v396 = vunpack.c.l.b16 %v316
        %v397 = vunpack.c.l.b16 %v317
        %v398 = vunpack.c.l.b16 %v318
        %v399 = vunpack.c.l.b16 %v319
        %v400 = vunpack.c.l.b16 %v320
        %v401 = vunpack.c.l.b16 %v321
        %v402 = vunpack.c.l.b16 %v322
        %v403 = vunpack.c.l.b16 %v323
        %v404 = vunpack.c.l.b16 %v324
        %v405 = vunpack.c.l.b16 %v325
        %v406 = vunpack.c.l.b16 %v326
        %v407 = vunpack.c.l.b16 %v327
        %v408 = vunpack.c.l.b16 %v328
        %v409 = vunpack.c.l.b16 %v329
        %v410 = vunpack.c.l.b16 %v330
        %v411 = vpack.c.b16 %v380, %v379
        %v412 = vpack.c.b16 %v382, %v381
        %v413 = vpack.c.b16 %v384, %v383
        %v414 = vpack.c.b16 %v386, %v385
        %v415 = vpack.c.b16 %v388, %v387
        %v416 = vpack.c.b16 %v390, %v389
        %v417 = vpack.c.b16 %v392, %v391
        %v418 = vpack.c.b16 %v394, %v393
        %v419 = vpack.c.b16 %v396, %v395
        %v420 = vpack.c.b16 %v398, %v397
        %v421 = vpack.c.b16 %v400, %v399
        %v422 = vpack.c.b16 %v402, %v401
        %v423 = vpack.c.b16 %v404, %v403
        %v424 = vpack.c.b16 %v406, %v405
        %v425 = vpack.c.b16 %v408, %v407
        %v426 = vpack.c.b16 %v410, %v409
        %v459 = vunpack.c.l.b16 %v331
        %v460 = vunpack.c.l.b16 %v332
        %v461 = vunpack.c.l.b16 %v333
        %v462 = vunpack.c.l.b16 %v334
        %v463 = vunpack.c.l.b16 %v335
        %v464 = vunpack.c.l.b16 %v336
        %v465 = vunpack.c.l.b16 %v337
        %v466 = vunpack.c.l.b16 %v338
        %v467 = vunpack.c.l.b16 %v339
        %v468 = vunpack.c.l.b16 %v340
        %v469 = vunpack.c.l.b16 %v341
        %v470 = vunpack.c.l.b16 %v342
        %v471 = vunpack.c.l.b16 %v343
        %v472 = vunpack.c.l.b16 %v344
        %v473 = vunpack.c.l.b16 %v345
        %v474 = vunpack.c.l.b16 %v346
        %v475 = vpack.c.b16 %v460, %v459
        %v476 = vpack.c.b16 %v462, %v461
        %v477 = vpack.c.b16 %v464, %v463
        %v478 = vpack.c.b16 %v466, %v465
        %v479 = vpack.c.b16 %v468, %v467
        %v480 = vpack.c.b16 %v470, %v469
        %v481 = vpack.c.b16 %v472, %v471
        %v482 = vpack.c.b16 %v474, %v473
        %491 = vmatpush.bf16.msra.mxu0 %v482
        %492 = vmatpush.bf16.msra.mxu0 %v481
        %493 = vmatpush.bf16.msra.mxu0 %v480
        %494 = vmatpush.bf16.msra.mxu0 %v479
        %495 = vmatpush.bf16.msra.mxu0 %v478
        %496 = vmatpush.bf16.msra.mxu0 %v477
        %497 = vmatpush.bf16.msra.mxu0 %v476
        %498 = vmatpush.bf16.msra.mxu0 %v475
        %499 = vmatmul.bf16.gmra.mxu0 %v411
        %v500 = vpop.f32.mrf.mxu0
        %v501 = vadd.f32 0.0, %v500
        %v502 = vpop.f32.mrf.mxu0
        %v503 = vadd.f32 0.0, %v502
        %504 = vmatmul.bf16.gmra.mxu0 %v412
        %v505 = vpop.f32.mrf.mxu0
        %v506 = vadd.f32 0.0, %v505
        %v507 = vpop.f32.mrf.mxu0
        %v508 = vadd.f32 0.0, %v507
        %509 = vmatmul.bf16.gmra.mxu0 %v413
        %v510 = vpop.f32.mrf.mxu0
        %v511 = vadd.f32 0.0, %v510
        %v512 = vpop.f32.mrf.mxu0
        %v513 = vadd.f32 0.0, %v512
        %514 = vmatmul.bf16.gmra.mxu0 %v414
        %v515 = vpop.f32.mrf.mxu0
        %v516 = vadd.f32 0.0, %v515
        %v517 = vpop.f32.mrf.mxu0
        %v518 = vadd.f32 0.0, %v517
        %519 = vmatmul.bf16.gmra.mxu0 %v415
        %v520 = vpop.f32.mrf.mxu0
        %v521 = vadd.f32 0.0, %v520
        %v522 = vpop.f32.mrf.mxu0
        %v523 = vadd.f32 0.0, %v522
        %524 = vmatmul.bf16.gmra.mxu0 %v416
        %v525 = vpop.f32.mrf.mxu0
        %v526 = vadd.f32 0.0, %v525
        %v527 = vpop.f32.mrf.mxu0
        %v528 = vadd.f32 0.0, %v527
        %529 = vmatmul.bf16.gmra.mxu0 %v417
        %v530 = vpop.f32.mrf.mxu0
        %v531 = vadd.f32 0.0, %v530
        %v532 = vpop.f32.mrf.mxu0
        %v533 = vadd.f32 0.0, %v532
        %534 = vmatmul.bf16.gmra.mxu0 %v418
        %v535 = vpop.f32.mrf.mxu0
        %v536 = vadd.f32 0.0, %v535
        %v537 = vpop.f32.mrf.mxu0
        %v538 = vadd.f32 0.0, %v537
        %539 = vmatmul.bf16.gmra.mxu0 %v419
        %v540 = vpop.f32.mrf.mxu0
        %v541 = vadd.f32 0.0, %v540
        %v542 = vpop.f32.mrf.mxu0
        %v543 = vadd.f32 0.0, %v542
        %544 = vmatmul.bf16.gmra.mxu0 %v420
        %v545 = vpop.f32.mrf.mxu0
        %v546 = vadd.f32 0.0, %v545
        %v547 = vpop.f32.mrf.mxu0
        %v548 = vadd.f32 0.0, %v547
        %549 = vmatmul.bf16.gmra.mxu0 %v421
        %v550 = vpop.f32.mrf.mxu0
        %v551 = vadd.f32 0.0, %v550
        %v552 = vpop.f32.mrf.mxu0
        %v553 = vadd.f32 0.0, %v552
        %554 = vmatmul.bf16.gmra.mxu0 %v422
        %v555 = vpop.f32.mrf.mxu0
        %v556 = vadd.f32 0.0, %v555
        %v557 = vpop.f32.mrf.mxu0
        %v558 = vadd.f32 0.0, %v557
        %559 = vmatmul.bf16.gmra.mxu0 %v423
        %v560 = vpop.f32.mrf.mxu0
        %v561 = vadd.f32 0.0, %v560
        %v562 = vpop.f32.mrf.mxu0
        %v563 = vadd.f32 0.0, %v562
        %564 = vmatmul.bf16.gmra.mxu0 %v424
        %v565 = vpop.f32.mrf.mxu0
        %v566 = vadd.f32 0.0, %v565
        %v567 = vpop.f32.mrf.mxu0
        %v568 = vadd.f32 0.0, %v567
        %569 = vmatmul.bf16.gmra.mxu0 %v425
        %v570 = vpop.f32.mrf.mxu0
        %v571 = vadd.f32 0.0, %v570
        %v572 = vpop.f32.mrf.mxu0
        %v573 = vadd.f32 0.0, %v572
        %574 = vmatmul.bf16.gmra.mxu0 %v426
        %v575 = vpop.f32.mrf.mxu0
        %v576 = vadd.f32 0.0, %v575
        %v577 = vpop.f32.mrf.mxu0
        %v578 = vadd.f32 0.0, %v577
        %579 = vdwg.mxu0
        %v580 = vld [vmem:[%s294] sm:$0x1]
        %v582 = vperm.slane %v580, 0
        %v584 = vmul.f32 %v501, %v582
        %v585 = vmul.f32 %v503, %v582
        %v586 = vmul.f32 %v506, %v582
        %v587 = vmul.f32 %v508, %v582
        %v588 = vmul.f32 %v511, %v582
        %v589 = vmul.f32 %v513, %v582
        %v590 = vmul.f32 %v516, %v582
        %v591 = vmul.f32 %v518, %v582
        %v592 = vmul.f32 %v521, %v582
        %v593 = vmul.f32 %v523, %v582
        %v594 = vmul.f32 %v526, %v582
        %v595 = vmul.f32 %v528, %v582
        %v596 = vmul.f32 %v531, %v582
        %v597 = vmul.f32 %v533, %v582
        %v598 = vmul.f32 %v536, %v582
        %v599 = vmul.f32 %v538, %v582
        %v600 = vmul.f32 %v541, %v582
        %v601 = vmul.f32 %v543, %v582
        %v602 = vmul.f32 %v546, %v582
        %v603 = vmul.f32 %v548, %v582
        %v604 = vmul.f32 %v551, %v582
        %v605 = vmul.f32 %v553, %v582
        %v606 = vmul.f32 %v556, %v582
        %v607 = vmul.f32 %v558, %v582
        %v608 = vmul.f32 %v561, %v582
        %v609 = vmul.f32 %v563, %v582
        %v610 = vmul.f32 %v566, %v582
        %v611 = vmul.f32 %v568, %v582
        %v612 = vmul.f32 %v571, %v582
        %v613 = vmul.f32 %v573, %v582
        %v614 = vmul.f32 %v576, %v582
        %v615 = vmul.f32 %v578, %v582
        %v616 = vld [vmem:[%s297] sm:$0x1]
        %v618 = vperm.slane %v616, 0
        %v620 = vadd.f32 %v584, %v618
        %v621 = vadd.f32 %v585, %v618
        %v622 = vadd.f32 %v586, %v618
        %v623 = vadd.f32 %v587, %v618
        %v624 = vadd.f32 %v588, %v618
        %v625 = vadd.f32 %v589, %v618
        %v626 = vadd.f32 %v590, %v618
        %v627 = vadd.f32 %v591, %v618
        %v628 = vadd.f32 %v592, %v618
        %v629 = vadd.f32 %v593, %v618
        %v630 = vadd.f32 %v594, %v618
        %v631 = vadd.f32 %v595, %v618
        %v632 = vadd.f32 %v596, %v618
        %v633 = vadd.f32 %v597, %v618
        %v634 = vadd.f32 %v598, %v618
        %v635 = vadd.f32 %v599, %v618
        %v636 = vadd.f32 %v600, %v618
        %v637 = vadd.f32 %v601, %v618
        %v638 = vadd.f32 %v602, %v618
        %v639 = vadd.f32 %v603, %v618
        %v640 = vadd.f32 %v604, %v618
        %v641 = vadd.f32 %v605, %v618
        %v642 = vadd.f32 %v606, %v618
        %v643 = vadd.f32 %v607, %v618
        %v644 = vadd.f32 %v608, %v618
        %v645 = vadd.f32 %v609, %v618
        %v646 = vadd.f32 %v610, %v618
        %v647 = vadd.f32 %v611, %v618
        %v648 = vadd.f32 %v612, %v618
        %v649 = vadd.f32 %v613, %v618
        %v650 = vadd.f32 %v614, %v618
        %v651 = vadd.f32 %v615, %v618
        %v652 = vxor.u32 %v620, 2147483648
        %v653 = vxor.u32 %v621, 2147483648
        %v654 = vxor.u32 %v622, 2147483648
        %v655 = vxor.u32 %v623, 2147483648
        %v656 = vxor.u32 %v624, 2147483648
        %v657 = vxor.u32 %v625, 2147483648
        %v658 = vxor.u32 %v626, 2147483648
        %v659 = vxor.u32 %v627, 2147483648
        %v660 = vxor.u32 %v628, 2147483648
        %v661 = vxor.u32 %v629, 2147483648
        %v662 = vxor.u32 %v630, 2147483648
        %v663 = vxor.u32 %v631, 2147483648
        %v664 = vxor.u32 %v632, 2147483648
        %v665 = vxor.u32 %v633, 2147483648
        %v666 = vxor.u32 %v634, 2147483648
        %v667 = vxor.u32 %v635, 2147483648
        %v668 = vxor.u32 %v636, 2147483648
        %v669 = vxor.u32 %v637, 2147483648
        %v670 = vxor.u32 %v638, 2147483648
        %v671 = vxor.u32 %v639, 2147483648
        %v672 = vxor.u32 %v640, 2147483648
        %v673 = vxor.u32 %v641, 2147483648
        %v674 = vxor.u32 %v642, 2147483648
        %v675 = vxor.u32 %v643, 2147483648
        %v676 = vxor.u32 %v644, 2147483648
        %v677 = vxor.u32 %v645, 2147483648
        %v678 = vxor.u32 %v646, 2147483648
        %v679 = vxor.u32 %v647, 2147483648
        %v680 = vxor.u32 %v648, 2147483648
        %v681 = vxor.u32 %v649, 2147483648
        %v682 = vxor.u32 %v650, 2147483648
        %v683 = vxor.u32 %v651, 2147483648
        %v684 = vmul.f32 %v652, 1.442695
        %v685 = vpow.pop %v684
        %v686 = vmul.f32 %v653, 1.442695
        %v687 = vpow.pop %v686
        %v688 = vmul.f32 %v654, 1.442695
        %v689 = vpow.pop %v688
        %v690 = vmul.f32 %v655, 1.442695
        %v691 = vpow.pop %v690
        %v692 = vmul.f32 %v656, 1.442695
        %v693 = vpow.pop %v692
        %v694 = vmul.f32 %v657, 1.442695
        %v695 = vpow.pop %v694
        %v696 = vmul.f32 %v658, 1.442695
        %v697 = vpow.pop %v696
        %v698 = vmul.f32 %v659, 1.442695
        %v699 = vpow.pop %v698
        %v700 = vmul.f32 %v660, 1.442695
        %v701 = vpow.pop %v700
        %v702 = vmul.f32 %v661, 1.442695
        %v703 = vpow.pop %v702
        %v704 = vmul.f32 %v662, 1.442695
        %v705 = vpow.pop %v704
        %v706 = vmul.f32 %v663, 1.442695
        %v707 = vpow.pop %v706
        %v708 = vmul.f32 %v664, 1.442695
        %v709 = vpow.pop %v708
        %v710 = vmul.f32 %v665, 1.442695
        %v711 = vpow.pop %v710
        %v712 = vmul.f32 %v666, 1.442695
        %v713 = vpow.pop %v712
        %v714 = vmul.f32 %v667, 1.442695
        %v715 = vpow.pop %v714
        %v716 = vmul.f32 %v668, 1.442695
        %v717 = vpow.pop %v716
        %v718 = vmul.f32 %v669, 1.442695
        %v719 = vpow.pop %v718
        %v720 = vmul.f32 %v670, 1.442695
        %v721 = vpow.pop %v720
        %v722 = vmul.f32 %v671, 1.442695
        %v723 = vpow.pop %v722
        %v724 = vmul.f32 %v672, 1.442695
        %v725 = vpow.pop %v724
        %v726 = vmul.f32 %v673, 1.442695
        %v727 = vpow.pop %v726
        %v728 = vmul.f32 %v674, 1.442695
        %v729 = vpow.pop %v728
        %v730 = vmul.f32 %v675, 1.442695
        %v731 = vpow.pop %v730
        %v732 = vmul.f32 %v676, 1.442695
        %v733 = vpow.pop %v732
        %v734 = vmul.f32 %v677, 1.442695
        %v735 = vpow.pop %v734
        %v736 = vmul.f32 %v678, 1.442695
        %v737 = vpow.pop %v736
        %v738 = vmul.f32 %v679, 1.442695
        %v739 = vpow.pop %v738
        %v740 = vmul.f32 %v680, 1.442695
        %v741 = vpow.pop %v740
        %v742 = vmul.f32 %v681, 1.442695
        %v743 = vpow.pop %v742
        %v744 = vmul.f32 %v682, 1.442695
        %v745 = vpow.pop %v744
        %v746 = vmul.f32 %v683, 1.442695
        %v747 = vpow.pop %v746
        %v748 = vadd.f32 %v685, 1.0
        %v749 = vadd.f32 %v687, 1.0
        %v750 = vadd.f32 %v689, 1.0
        %v751 = vadd.f32 %v691, 1.0
        %v752 = vadd.f32 %v693, 1.0
        %v753 = vadd.f32 %v695, 1.0
        %v754 = vadd.f32 %v697, 1.0
        %v755 = vadd.f32 %v699, 1.0
        %v756 = vadd.f32 %v701, 1.0
        %v757 = vadd.f32 %v703, 1.0
        %v758 = vadd.f32 %v705, 1.0
        %v759 = vadd.f32 %v707, 1.0
        %v760 = vadd.f32 %v709, 1.0
        %v761 = vadd.f32 %v711, 1.0
        %v762 = vadd.f32 %v713, 1.0
        %v763 = vadd.f32 %v715, 1.0
        %v764 = vadd.f32 %v717, 1.0
        %v765 = vadd.f32 %v719, 1.0
        %v766 = vadd.f32 %v721, 1.0
        %v767 = vadd.f32 %v723, 1.0
        %v768 = vadd.f32 %v725, 1.0
        %v769 = vadd.f32 %v727, 1.0
        %v770 = vadd.f32 %v729, 1.0
        %v771 = vadd.f32 %v731, 1.0
        %v772 = vadd.f32 %v733, 1.0
        %v773 = vadd.f32 %v735, 1.0
        %v774 = vadd.f32 %v737, 1.0
        %v775 = vadd.f32 %v739, 1.0
        %v776 = vadd.f32 %v741, 1.0
        %v777 = vadd.f32 %v743, 1.0
        %v778 = vadd.f32 %v745, 1.0
        %v779 = vadd.f32 %v747, 1.0
        %v780 = vrcp.pop %v748
        %v781 = vmul.f32 %v748, %v780
        %v782 = vsub.f32 1.0, %v781
        %v783 = vmul.f32 %v780, %v782
        %v784 = vadd.f32 %v780, %v783
        %vm785 = vweird.f32 %v748
        %vm786 = vweird.f32 %v780
        %vm787 = vmor %vm785, %vm786
        %v788 = vsel %vm787, %v780, %v784
        %v789 = vand.u32 2147483647, %v748
        %vm790 = vcmp.eq.f32.partialorder %v789, 8.507059e+37
        %v791 = vand.u32 %v748, 2147483648
        %v792 = vor.u32 1.1754944e-38, %v791
        %v793 = vsel %vm790, %v792, %v788
        %v794 = vmul.f32 1.0, %v793
        %v795 = vrcp.pop %v749
        %v796 = vmul.f32 %v749, %v795
        %v797 = vsub.f32 1.0, %v796
        %v798 = vmul.f32 %v795, %v797
        %v799 = vadd.f32 %v795, %v798
        %vm800 = vweird.f32 %v749
        %vm801 = vweird.f32 %v795
        %vm802 = vmor %vm800, %vm801
        %v803 = vsel %vm802, %v795, %v799
        %v804 = vand.u32 2147483647, %v749
        %vm805 = vcmp.eq.f32.partialorder %v804, 8.507059e+37
        %v806 = vand.u32 %v749, 2147483648
        %v807 = vor.u32 1.1754944e-38, %v806
        %v808 = vsel %vm805, %v807, %v803
        %v809 = vmul.f32 1.0, %v808
        %v810 = vrcp.pop %v750
        %v811 = vmul.f32 %v750, %v810
        %v812 = vsub.f32 1.0, %v811
        %v813 = vmul.f32 %v810, %v812
        %v814 = vadd.f32 %v810, %v813
        %vm815 = vweird.f32 %v750
        %vm816 = vweird.f32 %v810
        %vm817 = vmor %vm815, %vm816
        %v818 = vsel %vm817, %v810, %v814
        %v819 = vand.u32 2147483647, %v750
        %vm820 = vcmp.eq.f32.partialorder %v819, 8.507059e+37
        %v821 = vand.u32 %v750, 2147483648
        %v822 = vor.u32 1.1754944e-38, %v821
        %v823 = vsel %vm820, %v822, %v818
        %v824 = vmul.f32 1.0, %v823
        %v825 = vrcp.pop %v751
        %v826 = vmul.f32 %v751, %v825
        %v827 = vsub.f32 1.0, %v826
        %v828 = vmul.f32 %v825, %v827
        %v829 = vadd.f32 %v825, %v828
        %vm830 = vweird.f32 %v751
        %vm831 = vweird.f32 %v825
        %vm832 = vmor %vm830, %vm831
        %v833 = vsel %vm832, %v825, %v829
        %v834 = vand.u32 2147483647, %v751
        %vm835 = vcmp.eq.f32.partialorder %v834, 8.507059e+37
        %v836 = vand.u32 %v751, 2147483648
        %v837 = vor.u32 1.1754944e-38, %v836
        %v838 = vsel %vm835, %v837, %v833
        %v839 = vmul.f32 1.0, %v838
        %v840 = vrcp.pop %v752
        %v841 = vmul.f32 %v752, %v840
        %v842 = vsub.f32 1.0, %v841
        %v843 = vmul.f32 %v840, %v842
        %v844 = vadd.f32 %v840, %v843
        %vm845 = vweird.f32 %v752
        %vm846 = vweird.f32 %v840
        %vm847 = vmor %vm845, %vm846
        %v848 = vsel %vm847, %v840, %v844
        %v849 = vand.u32 2147483647, %v752
        %vm850 = vcmp.eq.f32.partialorder %v849, 8.507059e+37
        %v851 = vand.u32 %v752, 2147483648
        %v852 = vor.u32 1.1754944e-38, %v851
        %v853 = vsel %vm850, %v852, %v848
        %v854 = vmul.f32 1.0, %v853
        %v855 = vrcp.pop %v753
        %v856 = vmul.f32 %v753, %v855
        %v857 = vsub.f32 1.0, %v856
        %v858 = vmul.f32 %v855, %v857
        %v859 = vadd.f32 %v855, %v858
        %vm860 = vweird.f32 %v753
        %vm861 = vweird.f32 %v855
        %vm862 = vmor %vm860, %vm861
        %v863 = vsel %vm862, %v855, %v859
        %v864 = vand.u32 2147483647, %v753
        %vm865 = vcmp.eq.f32.partialorder %v864, 8.507059e+37
        %v866 = vand.u32 %v753, 2147483648
        %v867 = vor.u32 1.1754944e-38, %v866
        %v868 = vsel %vm865, %v867, %v863
        %v869 = vmul.f32 1.0, %v868
        %v870 = vrcp.pop %v754
        %v871 = vmul.f32 %v754, %v870
        %v872 = vsub.f32 1.0, %v871
        %v873 = vmul.f32 %v870, %v872
        %v874 = vadd.f32 %v870, %v873
        %vm875 = vweird.f32 %v754
        %vm876 = vweird.f32 %v870
        %vm877 = vmor %vm875, %vm876
        %v878 = vsel %vm877, %v870, %v874
        %v879 = vand.u32 2147483647, %v754
        %vm880 = vcmp.eq.f32.partialorder %v879, 8.507059e+37
        %v881 = vand.u32 %v754, 2147483648
        %v882 = vor.u32 1.1754944e-38, %v881
        %v883 = vsel %vm880, %v882, %v878
        %v884 = vmul.f32 1.0, %v883
        %v885 = vrcp.pop %v755
        %v886 = vmul.f32 %v755, %v885
        %v887 = vsub.f32 1.0, %v886
        %v888 = vmul.f32 %v885, %v887
        %v889 = vadd.f32 %v885, %v888
        %vm890 = vweird.f32 %v755
        %vm891 = vweird.f32 %v885
        %vm892 = vmor %vm890, %vm891
        %v893 = vsel %vm892, %v885, %v889
        %v894 = vand.u32 2147483647, %v755
        %vm895 = vcmp.eq.f32.partialorder %v894, 8.507059e+37
        %v896 = vand.u32 %v755, 2147483648
        %v897 = vor.u32 1.1754944e-38, %v896
        %v898 = vsel %vm895, %v897, %v893
        %v899 = vmul.f32 1.0, %v898
        %v900 = vrcp.pop %v756
        %v901 = vmul.f32 %v756, %v900
        %v902 = vsub.f32 1.0, %v901
        %v903 = vmul.f32 %v900, %v902
        %v904 = vadd.f32 %v900, %v903
        %vm905 = vweird.f32 %v756
        %vm906 = vweird.f32 %v900
        %vm907 = vmor %vm905, %vm906
        %v908 = vsel %vm907, %v900, %v904
        %v909 = vand.u32 2147483647, %v756
        %vm910 = vcmp.eq.f32.partialorder %v909, 8.507059e+37
        %v911 = vand.u32 %v756, 2147483648
        %v912 = vor.u32 1.1754944e-38, %v911
        %v913 = vsel %vm910, %v912, %v908
        %v914 = vmul.f32 1.0, %v913
        %v915 = vrcp.pop %v757
        %v916 = vmul.f32 %v757, %v915
        %v917 = vsub.f32 1.0, %v916
        %v918 = vmul.f32 %v915, %v917
        %v919 = vadd.f32 %v915, %v918
        %vm920 = vweird.f32 %v757
        %vm921 = vweird.f32 %v915
        %vm922 = vmor %vm920, %vm921
        %v923 = vsel %vm922, %v915, %v919
        %v924 = vand.u32 2147483647, %v757
        %vm925 = vcmp.eq.f32.partialorder %v924, 8.507059e+37
        %v926 = vand.u32 %v757, 2147483648
        %v927 = vor.u32 1.1754944e-38, %v926
        %v928 = vsel %vm925, %v927, %v923
        %v929 = vmul.f32 1.0, %v928
        %v930 = vrcp.pop %v758
        %v931 = vmul.f32 %v758, %v930
        %v932 = vsub.f32 1.0, %v931
        %v933 = vmul.f32 %v930, %v932
        %v934 = vadd.f32 %v930, %v933
        %vm935 = vweird.f32 %v758
        %vm936 = vweird.f32 %v930
        %vm937 = vmor %vm935, %vm936
        %v938 = vsel %vm937, %v930, %v934
        %v939 = vand.u32 2147483647, %v758
        %vm940 = vcmp.eq.f32.partialorder %v939, 8.507059e+37
        %v941 = vand.u32 %v758, 2147483648
        %v942 = vor.u32 1.1754944e-38, %v941
        %v943 = vsel %vm940, %v942, %v938
        %v944 = vmul.f32 1.0, %v943
        %v945 = vrcp.pop %v759
        %v946 = vmul.f32 %v759, %v945
        %v947 = vsub.f32 1.0, %v946
        %v948 = vmul.f32 %v945, %v947
        %v949 = vadd.f32 %v945, %v948
        %vm950 = vweird.f32 %v759
        %vm951 = vweird.f32 %v945
        %vm952 = vmor %vm950, %vm951
        %v953 = vsel %vm952, %v945, %v949
        %v954 = vand.u32 2147483647, %v759
        %vm955 = vcmp.eq.f32.partialorder %v954, 8.507059e+37
        %v956 = vand.u32 %v759, 2147483648
        %v957 = vor.u32 1.1754944e-38, %v956
        %v958 = vsel %vm955, %v957, %v953
        %v959 = vmul.f32 1.0, %v958
        %v960 = vrcp.pop %v760
        %v961 = vmul.f32 %v760, %v960
        %v962 = vsub.f32 1.0, %v961
        %v963 = vmul.f32 %v960, %v962
        %v964 = vadd.f32 %v960, %v963
        %vm965 = vweird.f32 %v760
        %vm966 = vweird.f32 %v960
        %vm967 = vmor %vm965, %vm966
        %v968 = vsel %vm967, %v960, %v964
        %v969 = vand.u32 2147483647, %v760
        %vm970 = vcmp.eq.f32.partialorder %v969, 8.507059e+37
        %v971 = vand.u32 %v760, 2147483648
        %v972 = vor.u32 1.1754944e-38, %v971
        %v973 = vsel %vm970, %v972, %v968
        %v974 = vmul.f32 1.0, %v973
        %v975 = vrcp.pop %v761
        %v976 = vmul.f32 %v761, %v975
        %v977 = vsub.f32 1.0, %v976
        %v978 = vmul.f32 %v975, %v977
        %v979 = vadd.f32 %v975, %v978
        %vm980 = vweird.f32 %v761
        %vm981 = vweird.f32 %v975
        %vm982 = vmor %vm980, %vm981
        %v983 = vsel %vm982, %v975, %v979
        %v984 = vand.u32 2147483647, %v761
        %vm985 = vcmp.eq.f32.partialorder %v984, 8.507059e+37
        %v986 = vand.u32 %v761, 2147483648
        %v987 = vor.u32 1.1754944e-38, %v986
        %v988 = vsel %vm985, %v987, %v983
        %v989 = vmul.f32 1.0, %v988
        %v990 = vrcp.pop %v762
        %v991 = vmul.f32 %v762, %v990
        %v992 = vsub.f32 1.0, %v991
        %v993 = vmul.f32 %v990, %v992
        %v994 = vadd.f32 %v990, %v993
        %vm995 = vweird.f32 %v762
        %vm996 = vweird.f32 %v990
        %vm997 = vmor %vm995, %vm996
        %v998 = vsel %vm997, %v990, %v994
        %v999 = vand.u32 2147483647, %v762
        %vm1000 = vcmp.eq.f32.partialorder %v999, 8.507059e+37
        %v1001 = vand.u32 %v762, 2147483648
        %v1002 = vor.u32 1.1754944e-38, %v1001
        %v1003 = vsel %vm1000, %v1002, %v998
        %v1004 = vmul.f32 1.0, %v1003
        %v1005 = vrcp.pop %v763
        %v1006 = vmul.f32 %v763, %v1005
        %v1007 = vsub.f32 1.0, %v1006
        %v1008 = vmul.f32 %v1005, %v1007
        %v1009 = vadd.f32 %v1005, %v1008
        %vm1010 = vweird.f32 %v763
        %vm1011 = vweird.f32 %v1005
        %vm1012 = vmor %vm1010, %vm1011
        %v1013 = vsel %vm1012, %v1005, %v1009
        %v1014 = vand.u32 2147483647, %v763
        %vm1015 = vcmp.eq.f32.partialorder %v1014, 8.507059e+37
        %v1016 = vand.u32 %v763, 2147483648
        %v1017 = vor.u32 1.1754944e-38, %v1016
        %v1018 = vsel %vm1015, %v1017, %v1013
        %v1019 = vmul.f32 1.0, %v1018
        %v1020 = vrcp.pop %v764
        %v1021 = vmul.f32 %v764, %v1020
        %v1022 = vsub.f32 1.0, %v1021
        %v1023 = vmul.f32 %v1020, %v1022
        %v1024 = vadd.f32 %v1020, %v1023
        %vm1025 = vweird.f32 %v764
        %vm1026 = vweird.f32 %v1020
        %vm1027 = vmor %vm1025, %vm1026
        %v1028 = vsel %vm1027, %v1020, %v1024
        %v1029 = vand.u32 2147483647, %v764
        %vm1030 = vcmp.eq.f32.partialorder %v1029, 8.507059e+37
        %v1031 = vand.u32 %v764, 2147483648
        %v1032 = vor.u32 1.1754944e-38, %v1031
        %v1033 = vsel %vm1030, %v1032, %v1028
        %v1034 = vmul.f32 1.0, %v1033
        %v1035 = vrcp.pop %v765
        %v1036 = vmul.f32 %v765, %v1035
        %v1037 = vsub.f32 1.0, %v1036
        %v1038 = vmul.f32 %v1035, %v1037
        %v1039 = vadd.f32 %v1035, %v1038
        %vm1040 = vweird.f32 %v765
        %vm1041 = vweird.f32 %v1035
        %vm1042 = vmor %vm1040, %vm1041
        %v1043 = vsel %vm1042, %v1035, %v1039
        %v1044 = vand.u32 2147483647, %v765
        %vm1045 = vcmp.eq.f32.partialorder %v1044, 8.507059e+37
        %v1046 = vand.u32 %v765, 2147483648
        %v1047 = vor.u32 1.1754944e-38, %v1046
        %v1048 = vsel %vm1045, %v1047, %v1043
        %v1049 = vmul.f32 1.0, %v1048
        %v1050 = vrcp.pop %v766
        %v1051 = vmul.f32 %v766, %v1050
        %v1052 = vsub.f32 1.0, %v1051
        %v1053 = vmul.f32 %v1050, %v1052
        %v1054 = vadd.f32 %v1050, %v1053
        %vm1055 = vweird.f32 %v766
        %vm1056 = vweird.f32 %v1050
        %vm1057 = vmor %vm1055, %vm1056
        %v1058 = vsel %vm1057, %v1050, %v1054
        %v1059 = vand.u32 2147483647, %v766
        %vm1060 = vcmp.eq.f32.partialorder %v1059, 8.507059e+37
        %v1061 = vand.u32 %v766, 2147483648
        %v1062 = vor.u32 1.1754944e-38, %v1061
        %v1063 = vsel %vm1060, %v1062, %v1058
        %v1064 = vmul.f32 1.0, %v1063
        %v1065 = vrcp.pop %v767
        %v1066 = vmul.f32 %v767, %v1065
        %v1067 = vsub.f32 1.0, %v1066
        %v1068 = vmul.f32 %v1065, %v1067
        %v1069 = vadd.f32 %v1065, %v1068
        %vm1070 = vweird.f32 %v767
        %vm1071 = vweird.f32 %v1065
        %vm1072 = vmor %vm1070, %vm1071
        %v1073 = vsel %vm1072, %v1065, %v1069
        %v1074 = vand.u32 2147483647, %v767
        %vm1075 = vcmp.eq.f32.partialorder %v1074, 8.507059e+37
        %v1076 = vand.u32 %v767, 2147483648
        %v1077 = vor.u32 1.1754944e-38, %v1076
        %v1078 = vsel %vm1075, %v1077, %v1073
        %v1079 = vmul.f32 1.0, %v1078
        %v1080 = vrcp.pop %v768
        %v1081 = vmul.f32 %v768, %v1080
        %v1082 = vsub.f32 1.0, %v1081
        %v1083 = vmul.f32 %v1080, %v1082
        %v1084 = vadd.f32 %v1080, %v1083
        %vm1085 = vweird.f32 %v768
        %vm1086 = vweird.f32 %v1080
        %vm1087 = vmor %vm1085, %vm1086
        %v1088 = vsel %vm1087, %v1080, %v1084
        %v1089 = vand.u32 2147483647, %v768
        %vm1090 = vcmp.eq.f32.partialorder %v1089, 8.507059e+37
        %v1091 = vand.u32 %v768, 2147483648
        %v1092 = vor.u32 1.1754944e-38, %v1091
        %v1093 = vsel %vm1090, %v1092, %v1088
        %v1094 = vmul.f32 1.0, %v1093
        %v1095 = vrcp.pop %v769
        %v1096 = vmul.f32 %v769, %v1095
        %v1097 = vsub.f32 1.0, %v1096
        %v1098 = vmul.f32 %v1095, %v1097
        %v1099 = vadd.f32 %v1095, %v1098
        %vm1100 = vweird.f32 %v769
        %vm1101 = vweird.f32 %v1095
        %vm1102 = vmor %vm1100, %vm1101
        %v1103 = vsel %vm1102, %v1095, %v1099
        %v1104 = vand.u32 2147483647, %v769
        %vm1105 = vcmp.eq.f32.partialorder %v1104, 8.507059e+37
        %v1106 = vand.u32 %v769, 2147483648
        %v1107 = vor.u32 1.1754944e-38, %v1106
        %v1108 = vsel %vm1105, %v1107, %v1103
        %v1109 = vmul.f32 1.0, %v1108
        %v1110 = vrcp.pop %v770
        %v1111 = vmul.f32 %v770, %v1110
        %v1112 = vsub.f32 1.0, %v1111
        %v1113 = vmul.f32 %v1110, %v1112
        %v1114 = vadd.f32 %v1110, %v1113
        %vm1115 = vweird.f32 %v770
        %vm1116 = vweird.f32 %v1110
        %vm1117 = vmor %vm1115, %vm1116
        %v1118 = vsel %vm1117, %v1110, %v1114
        %v1119 = vand.u32 2147483647, %v770
        %vm1120 = vcmp.eq.f32.partialorder %v1119, 8.507059e+37
        %v1121 = vand.u32 %v770, 2147483648
        %v1122 = vor.u32 1.1754944e-38, %v1121
        %v1123 = vsel %vm1120, %v1122, %v1118
        %v1124 = vmul.f32 1.0, %v1123
        %v1125 = vrcp.pop %v771
        %v1126 = vmul.f32 %v771, %v1125
        %v1127 = vsub.f32 1.0, %v1126
        %v1128 = vmul.f32 %v1125, %v1127
        %v1129 = vadd.f32 %v1125, %v1128
        %vm1130 = vweird.f32 %v771
        %vm1131 = vweird.f32 %v1125
        %vm1132 = vmor %vm1130, %vm1131
        %v1133 = vsel %vm1132, %v1125, %v1129
        %v1134 = vand.u32 2147483647, %v771
        %vm1135 = vcmp.eq.f32.partialorder %v1134, 8.507059e+37
        %v1136 = vand.u32 %v771, 2147483648
        %v1137 = vor.u32 1.1754944e-38, %v1136
        %v1138 = vsel %vm1135, %v1137, %v1133
        %v1139 = vmul.f32 1.0, %v1138
        %v1140 = vrcp.pop %v772
        %v1141 = vmul.f32 %v772, %v1140
        %v1142 = vsub.f32 1.0, %v1141
        %v1143 = vmul.f32 %v1140, %v1142
        %v1144 = vadd.f32 %v1140, %v1143
        %vm1145 = vweird.f32 %v772
        %vm1146 = vweird.f32 %v1140
        %vm1147 = vmor %vm1145, %vm1146
        %v1148 = vsel %vm1147, %v1140, %v1144
        %v1149 = vand.u32 2147483647, %v772
        %vm1150 = vcmp.eq.f32.partialorder %v1149, 8.507059e+37
        %v1151 = vand.u32 %v772, 2147483648
        %v1152 = vor.u32 1.1754944e-38, %v1151
        %v1153 = vsel %vm1150, %v1152, %v1148
        %v1154 = vmul.f32 1.0, %v1153
        %v1155 = vrcp.pop %v773
        %v1156 = vmul.f32 %v773, %v1155
        %v1157 = vsub.f32 1.0, %v1156
        %v1158 = vmul.f32 %v1155, %v1157
        %v1159 = vadd.f32 %v1155, %v1158
        %vm1160 = vweird.f32 %v773
        %vm1161 = vweird.f32 %v1155
        %vm1162 = vmor %vm1160, %vm1161
        %v1163 = vsel %vm1162, %v1155, %v1159
        %v1164 = vand.u32 2147483647, %v773
        %vm1165 = vcmp.eq.f32.partialorder %v1164, 8.507059e+37
        %v1166 = vand.u32 %v773, 2147483648
        %v1167 = vor.u32 1.1754944e-38, %v1166
        %v1168 = vsel %vm1165, %v1167, %v1163
        %v1169 = vmul.f32 1.0, %v1168
        %v1170 = vrcp.pop %v774
        %v1171 = vmul.f32 %v774, %v1170
        %v1172 = vsub.f32 1.0, %v1171
        %v1173 = vmul.f32 %v1170, %v1172
        %v1174 = vadd.f32 %v1170, %v1173
        %vm1175 = vweird.f32 %v774
        %vm1176 = vweird.f32 %v1170
        %vm1177 = vmor %vm1175, %vm1176
        %v1178 = vsel %vm1177, %v1170, %v1174
        %v1179 = vand.u32 2147483647, %v774
        %vm1180 = vcmp.eq.f32.partialorder %v1179, 8.507059e+37
        %v1181 = vand.u32 %v774, 2147483648
        %v1182 = vor.u32 1.1754944e-38, %v1181
        %v1183 = vsel %vm1180, %v1182, %v1178
        %v1184 = vmul.f32 1.0, %v1183
        %v1185 = vrcp.pop %v775
        %v1186 = vmul.f32 %v775, %v1185
        %v1187 = vsub.f32 1.0, %v1186
        %v1188 = vmul.f32 %v1185, %v1187
        %v1189 = vadd.f32 %v1185, %v1188
        %vm1190 = vweird.f32 %v775
        %vm1191 = vweird.f32 %v1185
        %vm1192 = vmor %vm1190, %vm1191
        %v1193 = vsel %vm1192, %v1185, %v1189
        %v1194 = vand.u32 2147483647, %v775
        %vm1195 = vcmp.eq.f32.partialorder %v1194, 8.507059e+37
        %v1196 = vand.u32 %v775, 2147483648
        %v1197 = vor.u32 1.1754944e-38, %v1196
        %v1198 = vsel %vm1195, %v1197, %v1193
        %v1199 = vmul.f32 1.0, %v1198
        %v1200 = vrcp.pop %v776
        %v1201 = vmul.f32 %v776, %v1200
        %v1202 = vsub.f32 1.0, %v1201
        %v1203 = vmul.f32 %v1200, %v1202
        %v1204 = vadd.f32 %v1200, %v1203
        %vm1205 = vweird.f32 %v776
        %vm1206 = vweird.f32 %v1200
        %vm1207 = vmor %vm1205, %vm1206
        %v1208 = vsel %vm1207, %v1200, %v1204
        %v1209 = vand.u32 2147483647, %v776
        %vm1210 = vcmp.eq.f32.partialorder %v1209, 8.507059e+37
        %v1211 = vand.u32 %v776, 2147483648
        %v1212 = vor.u32 1.1754944e-38, %v1211
        %v1213 = vsel %vm1210, %v1212, %v1208
        %v1214 = vmul.f32 1.0, %v1213
        %v1215 = vrcp.pop %v777
        %v1216 = vmul.f32 %v777, %v1215
        %v1217 = vsub.f32 1.0, %v1216
        %v1218 = vmul.f32 %v1215, %v1217
        %v1219 = vadd.f32 %v1215, %v1218
        %vm1220 = vweird.f32 %v777
        %vm1221 = vweird.f32 %v1215
        %vm1222 = vmor %vm1220, %vm1221
        %v1223 = vsel %vm1222, %v1215, %v1219
        %v1224 = vand.u32 2147483647, %v777
        %vm1225 = vcmp.eq.f32.partialorder %v1224, 8.507059e+37
        %v1226 = vand.u32 %v777, 2147483648
        %v1227 = vor.u32 1.1754944e-38, %v1226
        %v1228 = vsel %vm1225, %v1227, %v1223
        %v1229 = vmul.f32 1.0, %v1228
        %v1230 = vrcp.pop %v778
        %v1231 = vmul.f32 %v778, %v1230
        %v1232 = vsub.f32 1.0, %v1231
        %v1233 = vmul.f32 %v1230, %v1232
        %v1234 = vadd.f32 %v1230, %v1233
        %vm1235 = vweird.f32 %v778
        %vm1236 = vweird.f32 %v1230
        %vm1237 = vmor %vm1235, %vm1236
        %v1238 = vsel %vm1237, %v1230, %v1234
        %v1239 = vand.u32 2147483647, %v778
        %vm1240 = vcmp.eq.f32.partialorder %v1239, 8.507059e+37
        %v1241 = vand.u32 %v778, 2147483648
        %v1242 = vor.u32 1.1754944e-38, %v1241
        %v1243 = vsel %vm1240, %v1242, %v1238
        %v1244 = vmul.f32 1.0, %v1243
        %v1245 = vrcp.pop %v779
        %v1246 = vmul.f32 %v779, %v1245
        %v1247 = vsub.f32 1.0, %v1246
        %v1248 = vmul.f32 %v1245, %v1247
        %v1249 = vadd.f32 %v1245, %v1248
        %vm1250 = vweird.f32 %v779
        %vm1251 = vweird.f32 %v1245
        %vm1252 = vmor %vm1250, %vm1251
        %v1253 = vsel %vm1252, %v1245, %v1249
        %v1254 = vand.u32 2147483647, %v779
        %vm1255 = vcmp.eq.f32.partialorder %v1254, 8.507059e+37
        %v1256 = vand.u32 %v779, 2147483648
        %v1257 = vor.u32 1.1754944e-38, %v1256
        %v1258 = vsel %vm1255, %v1257, %v1253
        %v1259 = vmul.f32 1.0, %v1258
        %v1260 = vmul.f32 %v620, %v794
        %v1261 = vmul.f32 %v621, %v809
        %v1262 = vmul.f32 %v622, %v824
        %v1263 = vmul.f32 %v623, %v839
        %v1264 = vmul.f32 %v624, %v854
        %v1265 = vmul.f32 %v625, %v869
        %v1266 = vmul.f32 %v626, %v884
        %v1267 = vmul.f32 %v627, %v899
        %v1268 = vmul.f32 %v628, %v914
        %v1269 = vmul.f32 %v629, %v929
        %v1270 = vmul.f32 %v630, %v944
        %v1271 = vmul.f32 %v631, %v959
        %v1272 = vmul.f32 %v632, %v974
        %v1273 = vmul.f32 %v633, %v989
        %v1274 = vmul.f32 %v634, %v1004
        %v1275 = vmul.f32 %v635, %v1019
        %v1276 = vmul.f32 %v636, %v1034
        %v1277 = vmul.f32 %v637, %v1049
        %v1278 = vmul.f32 %v638, %v1064
        %v1279 = vmul.f32 %v639, %v1079
        %v1280 = vmul.f32 %v640, %v1094
        %v1281 = vmul.f32 %v641, %v1109
        %v1282 = vmul.f32 %v642, %v1124
        %v1283 = vmul.f32 %v643, %v1139
        %v1284 = vmul.f32 %v644, %v1154
        %v1285 = vmul.f32 %v645, %v1169
        %v1286 = vmul.f32 %v646, %v1184
        %v1287 = vmul.f32 %v647, %v1199
        %v1288 = vmul.f32 %v648, %v1214
        %v1289 = vmul.f32 %v649, %v1229
        %v1290 = vmul.f32 %v650, %v1244
        %v1291 = vmul.f32 %v651, %v1259
        %v1292 = vpack.c.bf16 %v1260, %v1260
        %v1293 = vpack.c.bf16 %v1261, %v1261
        %v1294 = vpack.c.bf16 %v1262, %v1262
        %v1295 = vpack.c.bf16 %v1263, %v1263
        %v1296 = vpack.c.bf16 %v1264, %v1264
        %v1297 = vpack.c.bf16 %v1265, %v1265
        %v1298 = vpack.c.bf16 %v1266, %v1266
        %v1299 = vpack.c.bf16 %v1267, %v1267
        %v1300 = vpack.c.bf16 %v1268, %v1268
        %v1301 = vpack.c.bf16 %v1269, %v1269
        %v1302 = vpack.c.bf16 %v1270, %v1270
        %v1303 = vpack.c.bf16 %v1271, %v1271
        %v1304 = vpack.c.bf16 %v1272, %v1272
        %v1305 = vpack.c.bf16 %v1273, %v1273
        %v1306 = vpack.c.bf16 %v1274, %v1274
        %v1307 = vpack.c.bf16 %v1275, %v1275
        %v1308 = vpack.c.bf16 %v1276, %v1276
        %v1309 = vpack.c.bf16 %v1277, %v1277
        %v1310 = vpack.c.bf16 %v1278, %v1278
        %v1311 = vpack.c.bf16 %v1279, %v1279
        %v1312 = vpack.c.bf16 %v1280, %v1280
        %v1313 = vpack.c.bf16 %v1281, %v1281
        %v1314 = vpack.c.bf16 %v1282, %v1282
        %v1315 = vpack.c.bf16 %v1283, %v1283
        %v1316 = vpack.c.bf16 %v1284, %v1284
        %v1317 = vpack.c.bf16 %v1285, %v1285
        %v1318 = vpack.c.bf16 %v1286, %v1286
        %v1319 = vpack.c.bf16 %v1287, %v1287
        %v1320 = vpack.c.bf16 %v1288, %v1288
        %v1321 = vpack.c.bf16 %v1289, %v1289
        %v1322 = vpack.c.bf16 %v1290, %v1290
        %v1323 = vpack.c.bf16 %v1291, %v1291
        %1324 = vst [vmem:[%s290] sm:$0xf] %v1292
        %1325 = vst [vmem:[%s290 + $0x4] sm:$0xf] %v1293
        %1326 = vst [vmem:[%s290 + $0x8] sm:$0xf] %v1294
        %1327 = vst [vmem:[%s290 + $0xc] sm:$0xf] %v1295
        %1328 = vst [vmem:[%s290 + $0x10] sm:$0xf] %v1296
        %1329 = vst [vmem:[%s290 + $0x14] sm:$0xf] %v1297
        %1330 = vst [vmem:[%s290 + $0x18] sm:$0xf] %v1298
        %1331 = vst [vmem:[%s290 + $0x1c] sm:$0xf] %v1299
        %1332 = vst [vmem:[%s290 + $0x20] sm:$0xf] %v1300
        %1333 = vst [vmem:[%s290 + $0x24] sm:$0xf] %v1301
        %1334 = vst [vmem:[%s290 + $0x28] sm:$0xf] %v1302
        %1335 = vst [vmem:[%s290 + $0x2c] sm:$0xf] %v1303
        %1336 = vst [vmem:[%s290 + $0x30] sm:$0xf] %v1304
        %1337 = vst [vmem:[%s290 + $0x34] sm:$0xf] %v1305
        %1338 = vst [vmem:[%s290 + $0x38] sm:$0xf] %v1306
        %1339 = vst [vmem:[%s290 + $0x3c] sm:$0xf] %v1307
        %1340 = vst [vmem:[%s290 + $0x40] sm:$0xf] %v1308
        %1341 = vst [vmem:[%s290 + $0x44] sm:$0xf] %v1309
        %1342 = vst [vmem:[%s290 + $0x48] sm:$0xf] %v1310
        %1343 = vst [vmem:[%s290 + $0x4c] sm:$0xf] %v1311
        %1344 = vst [vmem:[%s290 + $0x50] sm:$0xf] %v1312
        %1345 = vst [vmem:[%s290 + $0x54] sm:$0xf] %v1313
        %1346 = vst [vmem:[%s290 + $0x58] sm:$0xf] %v1314
        %1347 = vst [vmem:[%s290 + $0x5c] sm:$0xf] %v1315
        %1348 = vst [vmem:[%s290 + $0x60] sm:$0xf] %v1316
        %1349 = vst [vmem:[%s290 + $0x64] sm:$0xf] %v1317
        %1350 = vst [vmem:[%s290 + $0x68] sm:$0xf] %v1318
        %1351 = vst [vmem:[%s290 + $0x6c] sm:$0xf] %v1319
        %1352 = vst [vmem:[%s290 + $0x70] sm:$0xf] %v1320
        %1353 = vst [vmem:[%s290 + $0x74] sm:$0xf] %v1321
        %1354 = vst [vmem:[%s290 + $0x78] sm:$0xf] %v1322
        %1355 = vst [vmem:[%s290 + $0x7c] sm:$0xf] %v1323
        %s1356 = sand.u32 %s159, 1
        %s1357 = scalar_lea.sflag [#allocation4], %s1356
        %s1358 = sand.u32 %s159, 1
        %s1359 = smul.addr %s1358, 128
        %s1360 = scalar_lea.vmem [#allocation7], %s1359
        // Predicated region
        $region45: #{tpu_custom_call.1} parent=35 // pred_check
          %p1361 = pneg %p169
        $region46: #{tpu_custom_call.1} parent=35 // pred_check_branch
          %1363 = sbr.rel (%p1361) target = $region48
        $region47: #{tpu_custom_call.1} parent=35 // pred_region
          %s1364 = smul.u32 32, %s29
          %1366 = vsyncadd %s1357, 0
          %s1367 = sadd.s32 %s28, %s1364
          %s1368 = smul.addr %s27, 32
          %s1369 = sadd.s32 %s1367, %s1368
          %s1370 = smul.addr %s1369, 4
          %s1371 = scalar_lea.hbm %s4, %s1370
          %s1372 = sshll.u32 %s1360, 4
          %s1373 = int_to_ptr.vmem [resolvable:$true] %s1372
          %s1374 = sshll.u32 %s1371, 4
          %s1375 = int_to_ptr.hbm [resolvable:$true] %s1374
          %1380 = dma.vmem_to_hbm [thread:$0]  %s1373, 2048, %s1375, %s1357, 64, 64, 4
        $region48: #{tpu_custom_call.1} parent=35 // pred_fallthru
          _
      $region36: #{tpu_custom_call.1} parent=5 // pred_fallthru
        _
      %p1381 = scmp.le.s32.totalorder 2, %s17
      // Predicated region
      $region49: #{tpu_custom_call.1} parent=5 // pred_check
        %p1382 = pneg %p1381
      $region50: #{tpu_custom_call.1} parent=5 // pred_check_branch
        %1384 = sbr.rel (%p1382) target = $region52
      $region51: #{tpu_custom_call.1} parent=5 // pred_region
        %s1385 = ssub.s32 %s17, 2
        // Predicated region
        $region53: #{tpu_custom_call.1} parent=51 // pred_check
          %p1386 = pneg %p175
        $region54: #{tpu_custom_call.1} parent=51 // pred_check_branch
          %1388 = sbr.rel (%p1386) target = $region56
        $region55: #{tpu_custom_call.1} parent=51 // pred_region
          %s1389 = sand.u32 %s160, 1
          %s1390 = scalar_lea.sflag [#allocation4], %s1389
          %s1391 = sand.u32 %s160, 1
          %s1392 = smul.addr %s1391, 128
          %s1393 = scalar_lea.vmem [#allocation7], %s1392
          %1395 = dma.done %s1390, 2048
        $region56: #{tpu_custom_call.1} parent=51 // pred_fallthru
          _
      $region52: #{tpu_custom_call.1} parent=5 // pred_fallthru
        _
    $region6: #{tpu_custom_call.1} parent=1 // loop_footer
      %s21 = sadd.s32 1, %s17
    $region7: #{tpu_custom_call.1} parent=1 // loop_footer_branch
      %16 = sbr.rel target = $region3
    $region8: #{tpu_custom_call.1} parent=1 // loop_exit
      _
    %1396 = vsyncpa [#allocation3], 1
    %s1397 = scalar_lea.sflag [#allocation3], 1
    %1398 = vsyncpa %s1397, 1
    %1399 = vsyncpa [#allocation6], 1
    %1400 = vsyncpa [#allocation4], 1
    %s1401 = scalar_lea.sflag [#allocation4], 1
    %1402 = vsyncpa %s1401, 1

</llo_original>
